<compile_context>
chip_gen: v7x
topology: tpu7x:2x2x1
jax: 0.10.0
libtpu: 0.0.40
codegen_flags: <defaults>
</compile_context>

<pallas_src>
import functools

import jax
import jax.numpy as jnp
from jax.experimental import pallas as pl
from jax.experimental.pallas import tpu as pltpu


# ---------------------------------------------------------------------------
# Kernel 1: folded conv (single MXU contraction of depth K*K*Cin) + per-image
# BatchNorm statistics.  Grid: (N, Hout // TH).
# ---------------------------------------------------------------------------
def _conv_stats_kernel(mask_ref, x_ref, w_ref, y_ref, sum_ref, sq_ref,
                       patch_ref, *, K, TH, Wp, Cin, static_rows):
    i = pl.program_id(1)

    @pl.when(i == 0)
    def _init():                                   # per-image accumulator init
        sum_ref[...] = jnp.zeros_like(sum_ref)
        sq_ref[...] = jnp.zeros_like(sq_ref)

    cols = TH * Wp                                  # patch width (incl. junk cols)
    # Assemble the im2col patch in VMEM: each tap is ONE contiguous slab of the
    # flattened padded image -> lane-dense copies, no reshapes.
    for kh in range(K):
        for kw in range(K):
            c0 = (kh * K + kw) * Cin
            if static_rows:
                start = kh * Wp + kw                # python int -> static slice
                patch_ref[c0:c0 + Cin, :] = x_ref[:, start:start + cols]
            else:
                # Only taken when the image needs several row tiles; dynamic
                # lane-offset window load.
                start = (i * TH + kh) * Wp + kw
                patch_ref[c0:c0 + Cin, :] = x_ref[:, pl.ds(start, cols)]

    # ONE MXU matmul in standard orientation, f32 accumulation.
    y = jnp.dot(w_ref[...], patch_ref[...],
                preferred_element_type=jnp.float32)          # (Cout, TH*Wp)
    y = y * mask_ref[...]                                    # zero row-wrap junk

    y_ref[...] = y.astype(y_ref.dtype)                       # bf16 intermediate
    # BN batch statistics from the f32 result (before the bf16 cast).
    sum_ref[...] += jnp.sum(y, axis=1, keepdims=True)
    sq_ref[...] += jnp.sum(y * y, axis=1, keepdims=True)


# ---------------------------------------------------------------------------
# Kernel 2: BN normalize (precomputed per-channel scale/shift, one FMA) + PReLU,
# emitting NCHW output blocks directly (junk columns dropped by the row slice).
# ---------------------------------------------------------------------------
def _bn_prelu_kernel(y_ref, scale_ref, shift_ref, slope_ref, o_ref, *, wout):
    z = y_ref[:, :, :wout].astype(jnp.float32) * scale_ref[...] + shift_ref[...]
    o_ref[...] = jnp.where(z > 0, z, z * slope_ref[...]).astype(o_ref.dtype)


# ---------------------------------------------------------------------------
# Generation-aware budgets and tiling helpers.
# ---------------------------------------------------------------------------
def _chip_budget():
    """(conv lane-target, bn lane-target, vmem_limit_bytes) per chip class."""
    try:
        cap = pltpu.get_tpu_info().vmem_capacity_bytes
    except Exception:
        cap = 0
    if cap >= 96 * 1024 * 1024:          # v5e / v6e class: 128 MiB VMEM
        return 8192, 16384, 64 * 1024 * 1024
    if cap > 0:                          # v7x class: 64 MiB VMEM
        return 4096, 8192, 40 * 1024 * 1024
    return 2048, 4096, 32 * 1024 * 1024  # unknown: conservative


def _pick_row_tile(hout, wp, target_lanes):
    # TH must divide Hout and give a 128-multiple lane block (or be the whole
    # image so the block equals the full array extent).
    valid = [th for th in range(1, hout + 1)
             if hout % th == 0 and (th == hout or (th * wp) % 128 == 0)]
    fitting = [th for th in valid if th * wp <= target_lanes]
    return max(fitting) if fitting else min(valid)


def _pick_bn_rows(hout, wp, target_lanes):
    valid = [t for t in range(1, hout + 1)
             if hout % t == 0 and (t == hout or t % 8 == 0)]
    fitting = [t for t in valid if t * wp <= target_lanes]
    return max(fitting) if fitting else min(valid)


# ---------------------------------------------------------------------------
# Public wrapper: PyTorch-layout NCHW in / NCHW out.
# ---------------------------------------------------------------------------
def conv_batchnorm_prelu(x_nchw, weight_oihw, gamma, beta, prelu_weight, *,
                         stride=1, eps=1e-3, compute_dtype=jnp.bfloat16):
    """Conv2d(bias=False, padding=(K-1)//2) + BatchNorm2d(eps, training) + PReLU."""
    if stride != 1:
        # TODO(synk): stride>1 (ESPNet downsampling convs) needs strided patch
        # gathers; not implemented in this flat-W kernel.
        raise NotImplementedError("conv_batchnorm_prelu: only stride=1 is implemented")

    N, Cin, H, W = x_nchw.shape
    Cout, _, K, Kw = weight_oihw.shape
    assert K == Kw, "square kernels only"
    pad = (K - 1) // 2
    Hp, Wp = H + 2 * pad, W + 2 * pad
    Hout, Wout = Hp - K + 1, Wp - K + 1
    HWp = Hout * Wp
    M = N * Hout * Wout

    row_target, bn_target, vmem_limit = _chip_budget()
    TH = _pick_row_tile(Hout, Wp, row_target)
    n_h = Hout // TH
    TB = _pick_bn_rows(Hout, Wp, bn_target)

    # ---- layout-only glue (no transposes): zero-pad, flatten H*W; one extra
    # zero row at the bottom keeps every tap's flat slab in-bounds. ----
    x = jnp.pad(x_nchw.astype(compute_dtype),
                ((0, 0), (0, 0), (pad, pad + 1), (pad, pad)))
    x = x.reshape(N, Cin, (Hp + 1) * Wp)
    w_t = jnp.transpose(weight_oihw, (0, 2, 3, 1)).reshape(Cout, K * K * Cin)
    w_t = w_t.astype(compute_dtype)
    # Static valid-column mask: per output row, Wout valid columns then
    # (Wp - Wout) row-wrap junk columns.
    row_mask = jnp.concatenate([jnp.ones((Wout,), jnp.float32),
                                jnp.zeros((Wp - Wout,), jnp.float32)])
    mask = jnp.tile(row_mask, TH).reshape(1, TH * Wp)

    kern1 = functools.partial(_conv_stats_kernel, K=K, TH=TH, Wp=Wp, Cin=Cin,
                              static_rows=(n_h == 1))
    y_t, psum, psq = pl.pallas_call(
        kern1,
        grid=(N, n_h),
        in_specs=[
            pl.BlockSpec((1, TH * Wp), lambda n, i: (0, 0)),
            # Whole flattened padded image resident per batch step.  For very
            # large Cin*H*W re-tile here; on v5e, pipeline_mode=pl.Buffered(3)
            # is a further knob if DMA is exposed.
            pl.BlockSpec((None, Cin, (Hp + 1) * Wp), lambda n, i: (n, 0, 0)),
            pl.BlockSpec((Cout, K * K * Cin), lambda n, i: (0, 0)),
        ],
        out_specs=(
            pl.BlockSpec((None, Cout, TH * Wp), lambda n, i: (n, 0, i)),
            pl.BlockSpec((None, Cout, 1), lambda n, i: (n, 0, 0)),   # per-n sum
            pl.BlockSpec((None, Cout, 1), lambda n, i: (n, 0, 0)),   # per-n sumsq
        ),
        out_shape=(
            jax.ShapeDtypeStruct((N, Cout, HWp), compute_dtype),     # bf16 y
            jax.ShapeDtypeStruct((N, Cout, 1), jnp.float32),
            jax.ShapeDtypeStruct((N, Cout, 1), jnp.float32),
        ),
        scratch_shapes=[pltpu.VMEM((K * K * Cin, TH * Wp), compute_dtype)],
        compiler_params=pltpu.CompilerParams(
            # Per-n partial stats make the batch axis safely parallel (v7x).
            dimension_semantics=("parallel", "arbitrary"),
            vmem_limit_bytes=vmem_limit),
    )(mask, x, w_t)

    # ---- per-channel setup (negligible): scale/shift for the fused FMA ----
    csum = jnp.sum(psum, axis=0)                     # (Cout, 1)
    csq = jnp.sum(psq, axis=0)
    inv_m = 1.0 / float(M)
    mean = csum * inv_m
    var = csq * inv_m - mean * mean                  # biased batch variance (train)
    # TODO(synk): E[x^2]-E[x]^2 can cancel when |mean| >> std at very large M;
    # switch to a two-pass variance if that regime matters.
    inv = jax.lax.rsqrt(var + eps)
    g = gamma.reshape(Cout, 1).astype(jnp.float32)
    b = beta.reshape(Cout, 1).astype(jnp.float32)
    scale2 = inv * g
    shift2 = b - mean * scale2
    scale = scale2.reshape(Cout, 1, 1)
    shift = shift2.reshape(Cout, 1, 1)
    slope = prelu_weight.reshape(Cout, 1, 1).astype(jnp.float32)

    y4 = y_t.reshape(N, Cout, Hout, Wp)              # free view of the same bytes
    kern2 = functools.partial(_bn_prelu_kernel, wout=Wout)
    out = pl.pallas_call(
        kern2,
        grid=(N, Hout // TB),
        in_specs=[
            pl.BlockSpec((None, Cout, TB, Wp), lambda n, j: (n, 0, j, 0)),
            pl.BlockSpec((Cout, 1, 1), lambda n, j: (0, 0, 0)),
            pl.BlockSpec((Cout, 1, 1), lambda n, j: (0, 0, 0)),
            pl.BlockSpec((Cout, 1, 1), lambda n, j: (0, 0, 0)),
        ],
        out_specs=pl.BlockSpec((None, Cout, TB, Wout), lambda n, j: (n, 0, j, 0)),
        out_shape=jax.ShapeDtypeStruct((N, Cout, Hout, Wout), jnp.float32),
        compiler_params=pltpu.CompilerParams(
            dimension_semantics=("parallel", "parallel"),
            vmem_limit_bytes=vmem_limit),
    )(y4, scale, shift, slope)
    return out                                        # already NCHW


# ---------------------------------------------------------------------------
# Pure-JAX reference mirroring the kernel's precision choices (bf16 MXU inputs
# with f32 accumulation; stats from the f32 conv output; normalization applied
# to the bf16-stored intermediate), matching PyTorch
# Conv2d(bias=False) + BatchNorm2d(train) + PReLU.
# ---------------------------------------------------------------------------
def _reference(x, w, g, b, a, eps, compute_dtype):
    K = w.shape[-1]
    pad = (K - 1) // 2
    y = jax.lax.conv_general_dilated(
        x.astype(compute_dtype), w.astype(compute_dtype),
        window_strides=(1, 1),
        padding=[(pad, pad), (pad, pad)],
        dimension_numbers=("NCHW", "OIHW", "NCHW"),
        preferred_element_type=jnp.float32)
    mean = jnp.mean(y, axis=(0, 2, 3), keepdims=True)
    var = jnp.mean(y * y, axis=(0, 2, 3), keepdims=True) - mean * mean
    y_q = y.astype(compute_dtype).astype(jnp.float32)   # bf16 intermediate storage
    z = (y_q - mean) * jax.lax.rsqrt(var + eps) * g.reshape(1, -1, 1, 1) \
        + b.reshape(1, -1, 1, 1)
    return jnp.where(z > 0, z, z * a.reshape(1, -1, 1, 1))


if __name__ == "__main__":
    # Conv_BatchNorm_PReLU(number_of_input_channels=4, number_of_output_channels=8,
    #                      kernel_size=3, stride=1)
    N, Cin, Cout, H, W, K = 2, 4, 8, 16, 16, 3
    EPS = 1e-3

    key = jax.random.PRNGKey(0)
    kx, kw, kg, kb, ka = jax.random.split(key, 5)
    x = jax.random.normal(kx, (N, Cin, H, W), dtype=jnp.float32)
    weight = 0.1 * jax.random.normal(kw, (Cout, Cin, K, K), dtype=jnp.float32)
    gamma = 1.0 + 0.1 * jax.random.normal(kg, (Cout,), dtype=jnp.float32)
    beta = 0.1 * jax.random.normal(kb, (Cout,), dtype=jnp.float32)
    prelu = 0.25 + 0.05 * jax.random.normal(ka, (Cout,), dtype=jnp.float32)

    fwd = jax.jit(functools.partial(conv_batchnorm_prelu, stride=1, eps=EPS))
    out = jax.block_until_ready(fwd(x, weight, gamma, beta, prelu))

    ref = _reference(x, weight, gamma, beta, prelu, EPS, jnp.bfloat16)
    assert out.shape == (N, Cout, H, W), out.shape
    err = float(jnp.max(jnp.abs(out - ref)))
    assert jnp.allclose(out, ref, rtol=1e-3, atol=1e-3), f"max err {err}"

    print("KERNEL_OK")
</pallas_src>

<mosaic_0001>
module attributes {stable_mosaic.version = 11 : i64} {
  func.func @_conv_stats_kernel(%arg0: i32, %arg1: i32, %arg2: memref<1x288xf32, #tpu.memory_space<vmem>>, %arg3: memref<1x4x342xbf16, #tpu.memory_space<vmem>>, %arg4: memref<8x36xbf16, #tpu.memory_space<vmem>>, %arg5: memref<1x8x288xbf16, #tpu.memory_space<vmem>>, %arg6: memref<1x8x1xf32, #tpu.memory_space<vmem>>, %arg7: memref<1x8x1xf32, #tpu.memory_space<vmem>>, %arg8: memref<36x288xbf16, #tpu.memory_space<vmem>>) attributes {dimension_semantics = [#tpu.dimension_semantics<parallel>, #tpu.dimension_semantics<arbitrary>], iteration_bounds = array<i64: 2, 1>, scalar_prefetch = 0 : i64, scratch_operands = 1 : i64, tpu.core_type = #tpu.core_type<tc>, window_params = [{pipeline_mode = #tpu.pipeline_mode<synchronous>, transform_indices = @transform_0, window_bounds = array<i64: 1, 288>}, {transform_indices = @transform_1, window_bounds = array<i64: 1, 4, 342>}, {pipeline_mode = #tpu.pipeline_mode<synchronous>, transform_indices = @transform_2, window_bounds = array<i64: 8, 36>}, {transform_indices = @transform_3, window_bounds = array<i64: 1, 8, 288>}, {transform_indices = @transform_4, window_bounds = array<i64: 1, 8, 1>}, {transform_indices = @transform_5, window_bounds = array<i64: 1, 8, 1>}]} {
    %c0_i32 = arith.constant 0 : i32
    %0 = arith.cmpi eq, %arg1, %c0_i32 : i32
    %1 = arith.extui %0 : i1 to i32
    %c0_i32_0 = arith.constant 0 : i32
    %2 = arith.cmpi ne, %1, %c0_i32_0 : i32
    scf.if %2 {
      %cst_53 = arith.constant 0.000000e+00 : f32
      %57 = vector.broadcast %cst_53 : f32 to vector<8x1xf32>
      %c0_54 = arith.constant 0 : index
      %c0_55 = arith.constant 0 : index
      %c0_56 = arith.constant 0 : index
      %58 = vector.load %arg6[%c0_54, %c0_55, %c0_56] : memref<1x8x1xf32, #tpu.memory_space<vmem>>, vector<1x8x1xf32>
      %59 = vector.shape_cast %58 : vector<1x8x1xf32> to vector<8x1xf32>
      %60 = vector.shape_cast %57 : vector<8x1xf32> to vector<1x8x1xf32>
      tpu.vector_store %arg6[%c0_54, %c0_55, %c0_56], %60 {strides = array<i32>} : memref<1x8x1xf32, #tpu.memory_space<vmem>>, vector<1x8x1xf32>,
      %cst_57 = arith.constant 0.000000e+00 : f32
      %61 = vector.broadcast %cst_57 : f32 to vector<8x1xf32>
      %c0_58 = arith.constant 0 : index
      %c0_59 = arith.constant 0 : index
      %c0_60 = arith.constant 0 : index
      %62 = vector.load %arg7[%c0_58, %c0_59, %c0_60] : memref<1x8x1xf32, #tpu.memory_space<vmem>>, vector<1x8x1xf32>
      %63 = vector.shape_cast %62 : vector<1x8x1xf32> to vector<8x1xf32>
      %64 = vector.shape_cast %61 : vector<8x1xf32> to vector<1x8x1xf32>
      tpu.vector_store %arg7[%c0_58, %c0_59, %c0_60], %64 {strides = array<i32>} : memref<1x8x1xf32, #tpu.memory_space<vmem>>, vector<1x8x1xf32>,
    } else {
    }
    %c0 = arith.constant 0 : index
    %c0_1 = arith.constant 0 : index
    %c0_2 = arith.constant 0 : index
    %3 = vector.load %arg3[%c0, %c0_1, %c0_2] : memref<1x4x342xbf16, #tpu.memory_space<vmem>>, vector<1x4x288xbf16>
    %4 = vector.shape_cast %3 : vector<1x4x288xbf16> to vector<4x288xbf16>
    %c0_3 = arith.constant 0 : index
    %c0_4 = arith.constant 0 : index
    %5 = vector.load %arg8[%c0_3, %c0_4] : memref<36x288xbf16, #tpu.memory_space<vmem>>, vector<4x288xbf16>
    tpu.vector_store %arg8[%c0_3, %c0_4], %4 {strides = array<i32>} : memref<36x288xbf16, #tpu.memory_space<vmem>>, vector<4x288xbf16>,
    %c0_5 = arith.constant 0 : index
    %c0_6 = arith.constant 0 : index
    %c1 = arith.constant 1 : index
    %6 = vector.load %arg3[%c0_5, %c0_6, %c1] : memref<1x4x342xbf16, #tpu.memory_space<vmem>>, vector<1x4x288xbf16>
    %7 = vector.shape_cast %6 : vector<1x4x288xbf16> to vector<4x288xbf16>
    %c4 = arith.constant 4 : index
    %c0_7 = arith.constant 0 : index
    %8 = vector.load %arg8[%c4, %c0_7] : memref<36x288xbf16, #tpu.memory_space<vmem>>, vector<4x288xbf16>
    tpu.vector_store %arg8[%c4, %c0_7], %7 {strides = array<i32>} : memref<36x288xbf16, #tpu.memory_space<vmem>>, vector<4x288xbf16>,
    %c0_8 = arith.constant 0 : index
    %c0_9 = arith.constant 0 : index
    %c2 = arith.constant 2 : index
    %9 = vector.load %arg3[%c0_8, %c0_9, %c2] : memref<1x4x342xbf16, #tpu.memory_space<vmem>>, vector<1x4x288xbf16>
    %10 = vector.shape_cast %9 : vector<1x4x288xbf16> to vector<4x288xbf16>
    %c8 = arith.constant 8 : index
    %c0_10 = arith.constant 0 : index
    %11 = vector.load %arg8[%c8, %c0_10] : memref<36x288xbf16, #tpu.memory_space<vmem>>, vector<4x288xbf16>
    tpu.vector_store %arg8[%c8, %c0_10], %10 {strides = array<i32>} : memref<36x288xbf16, #tpu.memory_space<vmem>>, vector<4x288xbf16>,
    %c0_11 = arith.constant 0 : index
    %c0_12 = arith.constant 0 : index
    %c18 = arith.constant 18 : index
    %12 = vector.load %arg3[%c0_11, %c0_12, %c18] : memref<1x4x342xbf16, #tpu.memory_space<vmem>>, vector<1x4x288xbf16>
    %13 = vector.shape_cast %12 : vector<1x4x288xbf16> to vector<4x288xbf16>
    %c12 = arith.constant 12 : index
    %c0_13 = arith.constant 0 : index
    %14 = vector.load %arg8[%c12, %c0_13] : memref<36x288xbf16, #tpu.memory_space<vmem>>, vector<4x288xbf16>
    tpu.vector_store %arg8[%c12, %c0_13], %13 {strides = array<i32>} : memref<36x288xbf16, #tpu.memory_space<vmem>>, vector<4x288xbf16>,
    %c0_14 = arith.constant 0 : index
    %c0_15 = arith.constant 0 : index
    %c19 = arith.constant 19 : index
    %15 = vector.load %arg3[%c0_14, %c0_15, %c19] : memref<1x4x342xbf16, #tpu.memory_space<vmem>>, vector<1x4x288xbf16>
    %16 = vector.shape_cast %15 : vector<1x4x288xbf16> to vector<4x288xbf16>
    %c16 = arith.constant 16 : index
    %c0_16 = arith.constant 0 : index
    %17 = vector.load %arg8[%c16, %c0_16] : memref<36x288xbf16, #tpu.memory_space<vmem>>, vector<4x288xbf16>
    tpu.vector_store %arg8[%c16, %c0_16], %16 {strides = array<i32>} : memref<36x288xbf16, #tpu.memory_space<vmem>>, vector<4x288xbf16>,
    %c0_17 = arith.constant 0 : index
    %c0_18 = arith.constant 0 : index
    %c20 = arith.constant 20 : index
    %18 = vector.load %arg3[%c0_17, %c0_18, %c20] : memref<1x4x342xbf16, #tpu.memory_space<vmem>>, vector<1x4x288xbf16>
    %19 = vector.shape_cast %18 : vector<1x4x288xbf16> to vector<4x288xbf16>
    %c20_19 = arith.constant 20 : index
    %c0_20 = arith.constant 0 : index
    %20 = vector.load %arg8[%c20_19, %c0_20] : memref<36x288xbf16, #tpu.memory_space<vmem>>, vector<4x288xbf16>
    tpu.vector_store %arg8[%c20_19, %c0_20], %19 {strides = array<i32>} : memref<36x288xbf16, #tpu.memory_space<vmem>>, vector<4x288xbf16>,
    %c0_21 = arith.constant 0 : index
    %c0_22 = arith.constant 0 : index
    %c36 = arith.constant 36 : index
    %21 = vector.load %arg3[%c0_21, %c0_22, %c36] : memref<1x4x342xbf16, #tpu.memory_space<vmem>>, vector<1x4x288xbf16>
    %22 = vector.shape_cast %21 : vector<1x4x288xbf16> to vector<4x288xbf16>
    %c24 = arith.constant 24 : index
    %c0_23 = arith.constant 0 : index
    %23 = vector.load %arg8[%c24, %c0_23] : memref<36x288xbf16, #tpu.memory_space<vmem>>, vector<4x288xbf16>
    tpu.vector_store %arg8[%c24, %c0_23], %22 {strides = array<i32>} : memref<36x288xbf16, #tpu.memory_space<vmem>>, vector<4x288xbf16>,
    %c0_24 = arith.constant 0 : index
    %c0_25 = arith.constant 0 : index
    %c37 = arith.constant 37 : index
    %24 = vector.load %arg3[%c0_24, %c0_25, %c37] : memref<1x4x342xbf16, #tpu.memory_space<vmem>>, vector<1x4x288xbf16>
    %25 = vector.shape_cast %24 : vector<1x4x288xbf16> to vector<4x288xbf16>
    %c28 = arith.constant 28 : index
    %c0_26 = arith.constant 0 : index
    %26 = vector.load %arg8[%c28, %c0_26] : memref<36x288xbf16, #tpu.memory_space<vmem>>, vector<4x288xbf16>
    tpu.vector_store %arg8[%c28, %c0_26], %25 {strides = array<i32>} : memref<36x288xbf16, #tpu.memory_space<vmem>>, vector<4x288xbf16>,
    %c0_27 = arith.constant 0 : index
    %c0_28 = arith.constant 0 : index
    %c38 = arith.constant 38 : index
    %27 = vector.load %arg3[%c0_27, %c0_28, %c38] : memref<1x4x342xbf16, #tpu.memory_space<vmem>>, vector<1x4x288xbf16>
    %28 = vector.shape_cast %27 : vector<1x4x288xbf16> to vector<4x288xbf16>
    %c32 = arith.constant 32 : index
    %c0_29 = arith.constant 0 : index
    %29 = vector.load %arg8[%c32, %c0_29] : memref<36x288xbf16, #tpu.memory_space<vmem>>, vector<4x288xbf16>
    tpu.vector_store %arg8[%c32, %c0_29], %28 {strides = array<i32>} : memref<36x288xbf16, #tpu.memory_space<vmem>>, vector<4x288xbf16>,
    %c0_30 = arith.constant 0 : index
    %c0_31 = arith.constant 0 : index
    %30 = vector.load %arg4[%c0_30, %c0_31] : memref<8x36xbf16, #tpu.memory_space<vmem>>, vector<8x36xbf16>
    %c0_32 = arith.constant 0 : index
    %c0_33 = arith.constant 0 : index
    %31 = vector.load %arg8[%c0_32, %c0_33] : memref<36x288xbf16, #tpu.memory_space<vmem>>, vector<36x288xbf16>
    %cst = arith.constant dense<0.000000e+00> : vector<8x288xf32>
    %32 = tpu.matmul %30, %31, %cst {dimension_numbers = #tpu.dot_dimension_numbers<[1], [0], [0], [1], [0, 0, 1, 1], [], []>} : vector<8x36xbf16>, vector<36x288xbf16>, vector<8x288xf32> -> vector<8x288xf32>
    %c0_34 = arith.constant 0 : index
    %c0_35 = arith.constant 0 : index
    %33 = vector.load %arg2[%c0_34, %c0_35] : memref<1x288xf32, #tpu.memory_space<vmem>>, vector<1x288xf32>
    %34 = vector.broadcast %33 : vector<1x288xf32> to vector<8x288xf32>
    %35 = arith.mulf %32, %34 : vector<8x288xf32>
    %36 = arith.truncf %35 : vector<8x288xf32> to vector<8x288xbf16>
    %c0_36 = arith.constant 0 : index
    %c0_37 = arith.constant 0 : index
    %c0_38 = arith.constant 0 : index
    %37 = vector.load %arg5[%c0_36, %c0_37, %c0_38] : memref<1x8x288xbf16, #tpu.memory_space<vmem>>, vector<1x8x288xbf16>
    %38 = vector.shape_cast %37 : vector<1x8x288xbf16> to vector<8x288xbf16>
    %39 = vector.shape_cast %36 : vector<8x288xbf16> to vector<1x8x288xbf16>
    tpu.vector_store %arg5[%c0_36, %c0_37, %c0_38], %39 {strides = array<i32>} : memref<1x8x288xbf16, #tpu.memory_space<vmem>>, vector<1x8x288xbf16>,
    %c0_39 = arith.constant 0 : index
    %c0_40 = arith.constant 0 : index
    %c0_41 = arith.constant 0 : index
    %40 = vector.load %arg6[%c0_39, %c0_40, %c0_41] : memref<1x8x1xf32, #tpu.memory_space<vmem>>, vector<1x8x1xf32>
    %41 = vector.shape_cast %40 : vector<1x8x1xf32> to vector<8x1xf32>
    %cst_42 = arith.constant dense<0.000000e+00> : vector<8xf32>
    %42 = vector.multi_reduction <add>, %35, %cst_42 [1] : vector<8x288xf32> to vector<8xf32>
    %43 = vector.shape_cast %42 : vector<8xf32> to vector<8x1xf32>
    %44 = arith.addf %41, %43 : vector<8x1xf32>
    %c0_43 = arith.constant 0 : index
    %c0_44 = arith.constant 0 : index
    %c0_45 = arith.constant 0 : index
    %45 = vector.load %arg6[%c0_43, %c0_44, %c0_45] : memref<1x8x1xf32, #tpu.memory_space<vmem>>, vector<1x8x1xf32>
    %46 = vector.shape_cast %45 : vector<1x8x1xf32> to vector<8x1xf32>
    %47 = vector.shape_cast %44 : vector<8x1xf32> to vector<1x8x1xf32>
    tpu.vector_store %arg6[%c0_43, %c0_44, %c0_45], %47 {strides = array<i32>} : memref<1x8x1xf32, #tpu.memory_space<vmem>>, vector<1x8x1xf32>,
    %c0_46 = arith.constant 0 : index
    %c0_47 = arith.constant 0 : index
    %c0_48 = arith.constant 0 : index
    %48 = vector.load %arg7[%c0_46, %c0_47, %c0_48] : memref<1x8x1xf32, #tpu.memory_space<vmem>>, vector<1x8x1xf32>
    %49 = vector.shape_cast %48 : vector<1x8x1xf32> to vector<8x1xf32>
    %50 = arith.mulf %35, %35 : vector<8x288xf32>
    %cst_49 = arith.constant dense<0.000000e+00> : vector<8xf32>
    %51 = vector.multi_reduction <add>, %50, %cst_49 [1] : vector<8x288xf32> to vector<8xf32>
    %52 = vector.shape_cast %51 : vector<8xf32> to vector<8x1xf32>
    %53 = arith.addf %49, %52 : vector<8x1xf32>
    %c0_50 = arith.constant 0 : index
    %c0_51 = arith.constant 0 : index
    %c0_52 = arith.constant 0 : index
    %54 = vector.load %arg7[%c0_50, %c0_51, %c0_52] : memref<1x8x1xf32, #tpu.memory_space<vmem>>, vector<1x8x1xf32>
    %55 = vector.shape_cast %54 : vector<1x8x1xf32> to vector<8x1xf32>
    %56 = vector.shape_cast %53 : vector<8x1xf32> to vector<1x8x1xf32>
    tpu.vector_store %arg7[%c0_50, %c0_51, %c0_52], %56 {strides = array<i32>} : memref<1x8x1xf32, #tpu.memory_space<vmem>>, vector<1x8x1xf32>,
    return
  }
  func.func @transform_0(%arg0: i32, %arg1: i32) -> (i32, i32) {
    %c0_i32 = arith.constant 0 : i32
    %c0_i32_0 = arith.constant 0 : i32
    %c0_i32_1 = arith.constant 0 : i32
    return %c0_i32, %c0_i32_0 : i32, i32
  }
  func.func @transform_1(%arg0: i32, %arg1: i32) -> (i32, i32, i32) {
    %c0_i32 = arith.constant 0 : i32
    %c0_i32_0 = arith.constant 0 : i32
    %c0_i32_1 = arith.constant 0 : i32
    return %arg0, %c0_i32, %c0_i32_0 : i32, i32, i32
  }
  func.func @transform_2(%arg0: i32, %arg1: i32) -> (i32, i32) {
    %c0_i32 = arith.constant 0 : i32
    %c0_i32_0 = arith.constant 0 : i32
    %c0_i32_1 = arith.constant 0 : i32
    return %c0_i32, %c0_i32_0 : i32, i32
  }
  func.func @transform_3(%arg0: i32, %arg1: i32) -> (i32, i32, i32) {
    %c0_i32 = arith.constant 0 : i32
    %c0_i32_0 = arith.constant 0 : i32
    return %arg0, %c0_i32, %arg1 : i32, i32, i32
  }
  func.func @transform_4(%arg0: i32, %arg1: i32) -> (i32, i32, i32) {
    %c0_i32 = arith.constant 0 : i32
    %c0_i32_0 = arith.constant 0 : i32
    %c0_i32_1 = arith.constant 0 : i32
    return %arg0, %c0_i32, %c0_i32_0 : i32, i32, i32
  }
  func.func @transform_5(%arg0: i32, %arg1: i32) -> (i32, i32, i32) {
    %c0_i32 = arith.constant 0 : i32
    %c0_i32_0 = arith.constant 0 : i32
    %c0_i32_1 = arith.constant 0 : i32
    return %arg0, %c0_i32, %c0_i32_0 : i32, i32, i32
  }
}

module attributes {stable_mosaic.version = 11 : i64} {
  func.func @_bn_prelu_kernel(%arg0: i32, %arg1: i32, %arg2: memref<1x8x16x18xbf16, #tpu.memory_space<vmem>>, %arg3: memref<8x1x1xf32, #tpu.memory_space<vmem>>, %arg4: memref<8x1x1xf32, #tpu.memory_space<vmem>>, %arg5: memref<8x1x1xf32, #tpu.memory_space<vmem>>, %arg6: memref<1x8x16x16xf32, #tpu.memory_space<vmem>>) attributes {dimension_semantics = [#tpu.dimension_semantics<parallel>, #tpu.dimension_semantics<parallel>], iteration_bounds = array<i64: 2, 1>, scalar_prefetch = 0 : i64, scratch_operands = 0 : i64, tpu.core_type = #tpu.core_type<tc>, window_params = [{transform_indices = @transform_0, window_bounds = array<i64: 1, 8, 16, 18>}, {pipeline_mode = #tpu.pipeline_mode<synchronous>, transform_indices = @transform_1, window_bounds = array<i64: 8, 1, 1>}, {pipeline_mode = #tpu.pipeline_mode<synchronous>, transform_indices = @transform_2, window_bounds = array<i64: 8, 1, 1>}, {pipeline_mode = #tpu.pipeline_mode<synchronous>, transform_indices = @transform_3, window_bounds = array<i64: 8, 1, 1>}, {transform_indices = @transform_4, window_bounds = array<i64: 1, 8, 16, 16>}]} {
    %c0 = arith.constant 0 : index
    %c0_0 = arith.constant 0 : index
    %c0_1 = arith.constant 0 : index
    %c0_2 = arith.constant 0 : index
    %0 = vector.load %arg2[%c0, %c0_0, %c0_1, %c0_2] : memref<1x8x16x18xbf16, #tpu.memory_space<vmem>>, vector<1x8x16x16xbf16>
    %1 = vector.shape_cast %0 : vector<1x8x16x16xbf16> to vector<8x16x16xbf16>
    %2 = arith.extf %1 : vector<8x16x16xbf16> to vector<8x16x16xf32>
    %c0_3 = arith.constant 0 : index
    %c0_4 = arith.constant 0 : index
    %c0_5 = arith.constant 0 : index
    %3 = vector.load %arg3[%c0_3, %c0_4, %c0_5] : memref<8x1x1xf32, #tpu.memory_space<vmem>>, vector<8x1x1xf32>
    %4 = vector.broadcast %3 : vector<8x1x1xf32> to vector<8x16x16xf32>
    %5 = arith.mulf %2, %4 : vector<8x16x16xf32>
    %c0_6 = arith.constant 0 : index
    %c0_7 = arith.constant 0 : index
    %c0_8 = arith.constant 0 : index
    %6 = vector.load %arg4[%c0_6, %c0_7, %c0_8] : memref<8x1x1xf32, #tpu.memory_space<vmem>>, vector<8x1x1xf32>
    %7 = vector.broadcast %6 : vector<8x1x1xf32> to vector<8x16x16xf32>
    %8 = arith.addf %5, %7 : vector<8x16x16xf32>
    %cst = arith.constant 0.000000e+00 : f32
    %9 = vector.broadcast %cst : f32 to vector<8x16x16xf32>
    %10 = arith.cmpf ogt, %8, %9 : vector<8x16x16xf32>
    %c0_9 = arith.constant 0 : index
    %c0_10 = arith.constant 0 : index
    %c0_11 = arith.constant 0 : index
    %11 = vector.load %arg5[%c0_9, %c0_10, %c0_11] : memref<8x1x1xf32, #tpu.memory_space<vmem>>, vector<8x1x1xf32>
    %12 = vector.broadcast %11 : vector<8x1x1xf32> to vector<8x16x16xf32>
    %13 = arith.mulf %8, %12 : vector<8x16x16xf32>
    %14 = arith.select %10, %8, %13 : vector<8x16x16xi1>, vector<8x16x16xf32>
    %c0_12 = arith.constant 0 : index
    %c0_13 = arith.constant 0 : index
    %c0_14 = arith.constant 0 : index
    %c0_15 = arith.constant 0 : index
    %15 = vector.load %arg6[%c0_12, %c0_13, %c0_14, %c0_15] : memref<1x8x16x16xf32, #tpu.memory_space<vmem>>, vector<1x8x16x16xf32>
    %16 = vector.shape_cast %15 : vector<1x8x16x16xf32> to vector<8x16x16xf32>
    %17 = vector.shape_cast %14 : vector<8x16x16xf32> to vector<1x8x16x16xf32>
    tpu.vector_store %arg6[%c0_12, %c0_13, %c0_14, %c0_15], %17 {strides = array<i32>} : memref<1x8x16x16xf32, #tpu.memory_space<vmem>>, vector<1x8x16x16xf32>,
    return
  }
  func.func @transform_0(%arg0: i32, %arg1: i32) -> (i32, i32, i32, i32) {
    %c0_i32 = arith.constant 0 : i32
    %c0_i32_0 = arith.constant 0 : i32
    %c0_i32_1 = arith.constant 0 : i32
    return %arg0, %c0_i32, %arg1, %c0_i32_0 : i32, i32, i32, i32
  }
  func.func @transform_1(%arg0: i32, %arg1: i32) -> (i32, i32, i32) {
    %c0_i32 = arith.constant 0 : i32
    %c0_i32_0 = arith.constant 0 : i32
    %c0_i32_1 = arith.constant 0 : i32
    %c0_i32_2 = arith.constant 0 : i32
    return %c0_i32, %c0_i32_0, %c0_i32_1 : i32, i32, i32
  }
  func.func @transform_2(%arg0: i32, %arg1: i32) -> (i32, i32, i32) {
    %c0_i32 = arith.constant 0 : i32
    %c0_i32_0 = arith.constant 0 : i32
    %c0_i32_1 = arith.constant 0 : i32
    %c0_i32_2 = arith.constant 0 : i32
    return %c0_i32, %c0_i32_0, %c0_i32_1 : i32, i32, i32
  }
  func.func @transform_3(%arg0: i32, %arg1: i32) -> (i32, i32, i32) {
    %c0_i32 = arith.constant 0 : i32
    %c0_i32_0 = arith.constant 0 : i32
    %c0_i32_1 = arith.constant 0 : i32
    %c0_i32_2 = arith.constant 0 : i32
    return %c0_i32, %c0_i32_0, %c0_i32_1 : i32, i32, i32
  }
  func.func @transform_4(%arg0: i32, %arg1: i32) -> (i32, i32, i32, i32) {
    %c0_i32 = arith.constant 0 : i32
    %c0_i32_0 = arith.constant 0 : i32
    %c0_i32_1 = arith.constant 0 : i32
    return %arg0, %c0_i32, %arg1, %c0_i32_0 : i32, i32, i32, i32
  }
}

</mosaic_0001>

<llo_original>
// kernel: tile.6
$region0: #{tile.6}
  #allocation0 [shape = 's32[1]{0}', space=sflag, size = 0x4, scoped, tag = 'scoped memory for tile.6']
  %s0 = inlined_call_operand.vmem [shape: f32[18], index: 0, kind: input, shape index: {}]
  %s1 = inlined_call_operand.vmem [shape: f32[16,18], index: 1, kind: output, shape index: {}]
  // Predicated region
  $region2: #{tile.6} parent=0 // pred_check
    _
  $region3: #{tile.6} parent=0 // pred_check_branch
    %3 = sbr.rel (0) target = $region5
  $region4: #{tile.6} parent=0 // pred_region
    _
  $region5: #{tile.6} parent=0 // pred_fallthru
    _
  %v4 = vld [vmem:[%s0] ss:$0 sm:$0xff]
  %5 = vst [vmem:[%s1] sm:$0xff] %v4
  %s6 = scalar_lea.vmem %s1, 8
  %7 = vst [vmem:[%s6] sm:$0xff] %v4

// kernel: tile.7
$region0: #{tile.7}
  %s0 = inlined_call_operand.vmem [shape: f32[16,18], index: 0, kind: input, shape index: {}]
  %s1 = inlined_call_operand.vmem [shape: f32[1,288], index: 1, kind: output, shape index: {}]
  $region1: #{tile.7} parent=0
    #allocation0 [shape = 'u8[12288]{0}', space=vmem, size = 0x3000, scoped, tag = 'scoped mem for output reshape']
    %v2 = vld [vmem:[%s0] sm:$0x1]
    %vm3 = vcmask 146432
    %4 = vst.msk [vmem:[#allocation0] sm:$0x1] %vm3, %v2
    %s5 = scalar_lea.vmem %s0, 7
    %v6 = vld [vmem:[%s5] sm:$0x1]
    %s7 = scalar_lea.vmem %s0, 7
    %v8 = vld [vmem:[%s7] sm:$0x1]
    %vm9 = vcmask 15360
    %v10 = vsel %vm9, %v8, %v6
    %11 = vrot.lane.b32.xlu0 %v10, 126
    %v12 = vpop.permute.xlu0 %11
    %vm13 = vcmask 130048
    %s14 = scalar_lea.vmem [#allocation0], 8
    %15 = vst.msk [vmem:[%s14] sm:$0x1] %vm13, %v12
    %vm16 = vcmask 1048560
    %17 = vst.msk [vmem:[#allocation0] sm:$0x1] %vm16, %v12
    %s18 = scalar_lea.vmem %s0, 14
    %v19 = vld [vmem:[%s18] sm:$0x1]
    %s20 = scalar_lea.vmem %s0, 14
    %v21 = vld [vmem:[%s20] sm:$0x1]
    %vm22 = vcmask 31744
    %v23 = vsel %vm22, %v21, %v19
    %24 = vrot.lane.b32.xlu0 %v23, 124
    %v25 = vpop.permute.xlu0 %24
    %vm26 = vcmask 113664
    %s27 = scalar_lea.vmem [#allocation0], 16
    %28 = vst.msk [vmem:[%s27] sm:$0x1] %vm26, %v25
    %vm29 = vcmask 1048544
    %s30 = scalar_lea.vmem [#allocation0], 8
    %31 = vst.msk [vmem:[%s30] sm:$0x1] %vm29, %v25
    %s32 = scalar_lea.vmem %s0, 6
    %v33 = vld [vmem:[%s32] sm:$0x1]
    %34 = vrot.lane.b32.xlu0 %v33, 108
    %v35 = vpop.permute.xlu0 %34
    %vm36 = vcmask 1032032
    %37 = vst.msk [vmem:[#allocation0] sm:$0x1] %vm36, %v35
    %s38 = scalar_lea.vmem %s0, 13
    %v39 = vld [vmem:[%s38] sm:$0x1]
    %40 = vrot.lane.b32.xlu0 %v39, 106
    %v41 = vpop.permute.xlu0 %40
    %vm42 = vcmask 1015632
    %s43 = scalar_lea.vmem [#allocation0], 8
    %44 = vst.msk [vmem:[%s43] sm:$0x1] %vm42, %v41
    %s45 = scalar_lea.vmem %s0, 5
    %v46 = vld [vmem:[%s45] sm:$0x1]
    %47 = vrot.lane.b32.xlu0 %v46, 90
    %v48 = vpop.permute.xlu0 %47
    %vm49 = vcmask 884432
    %50 = vst.msk [vmem:[#allocation0] sm:$0x1] %vm49, %v48
    %s51 = scalar_lea.vmem %s0, 12
    %v52 = vld [vmem:[%s51] sm:$0x1]
    %53 = vrot.lane.b32.xlu0 %v52, 88
    %v54 = vpop.permute.xlu0 %53
    %vm55 = vcmask 868032
    %s56 = scalar_lea.vmem [#allocation0], 8
    %57 = vst.msk [vmem:[%s56] sm:$0x1] %vm55, %v54
    %s58 = scalar_lea.vmem %s0, 4
    %v59 = vld [vmem:[%s58] sm:$0x1]
    %60 = vrot.lane.b32.xlu0 %v59, 72
    %v61 = vpop.permute.xlu0 %60
    %vm62 = vcmask 736832
    %63 = vst.msk [vmem:[#allocation0] sm:$0x1] %vm62, %v61
    %s64 = scalar_lea.vmem %s0, 11
    %v65 = vld [vmem:[%s64] sm:$0x1]
    %66 = vrot.lane.b32.xlu0 %v65, 70
    %v67 = vpop.permute.xlu0 %66
    %vm68 = vcmask 720432
    %s69 = scalar_lea.vmem [#allocation0], 8
    %70 = vst.msk [vmem:[%s69] sm:$0x1] %vm68, %v67
    %s71 = scalar_lea.vmem %s0, 3
    %v72 = vld [vmem:[%s71] sm:$0x1]
    %73 = vrot.lane.b32.xlu0 %v72, 54
    %v74 = vpop.permute.xlu0 %73
    %vm75 = vcmask 589232
    %76 = vst.msk [vmem:[#allocation0] sm:$0x1] %vm75, %v74
    %s77 = scalar_lea.vmem %s0, 10
    %v78 = vld [vmem:[%s77] sm:$0x1]
    %79 = vrot.lane.b32.xlu0 %v78, 52
    %v80 = vpop.permute.xlu0 %79
    %vm81 = vcmask 572832
    %s82 = scalar_lea.vmem [#allocation0], 8
    %83 = vst.msk [vmem:[%s82] sm:$0x1] %vm81, %v80
    %s84 = scalar_lea.vmem %s0, 2
    %v85 = vld [vmem:[%s84] sm:$0x1]
    %86 = vrot.lane.b32.xlu0 %v85, 36
    %v87 = vpop.permute.xlu0 %86
    %vm88 = vcmask 441632
    %89 = vst.msk [vmem:[#allocation0] sm:$0x1] %vm88, %v87
    %s90 = scalar_lea.vmem %s0, 9
    %v91 = vld [vmem:[%s90] sm:$0x1]
    %92 = vrot.lane.b32.xlu0 %v91, 34
    %v93 = vpop.permute.xlu0 %92
    %vm94 = vcmask 425232
    %s95 = scalar_lea.vmem [#allocation0], 8
    %96 = vst.msk [vmem:[%s95] sm:$0x1] %vm94, %v93
    %s97 = scalar_lea.vmem %s0, 1
    %v98 = vld [vmem:[%s97] sm:$0x1]
    %99 = vrot.lane.b32.xlu0 %v98, 18
    %v100 = vpop.permute.xlu0 %99
    %vm101 = vcmask 294032
    %102 = vst.msk [vmem:[#allocation0] sm:$0x1] %vm101, %v100
    %s103 = scalar_lea.vmem %s0, 8
    %v104 = vld [vmem:[%s103] sm:$0x1]
    %105 = vrot.lane.b32.xlu0 %v104, 16
    %v106 = vpop.permute.xlu0 %105
    %vm107 = vcmask 277632
    %s108 = scalar_lea.vmem [#allocation0], 8
    %109 = vst.msk [vmem:[%s108] sm:$0x1] %vm107, %v106
    %s110 = scalar_lea.vmem %s0, 15
    %v111 = vld [vmem:[%s110] sm:$0x1]
    %112 = vrot.lane.b32.xlu0 %v111, 14
    %v113 = vpop.permute.xlu0 %112
    %vm114 = vcmask 261232
    %s115 = scalar_lea.vmem [#allocation0], 16
    %116 = vst.msk [vmem:[%s115] sm:$0x1] %vm114, %v113
    %s118 = sshllo.u32 0, 1
    %v120 = vld [vmem:[#allocation0] sm:%s118]
    %s121 = sshllo.u32 0, 1
    %122 = vst [vmem:[%s1] sm:%s121] %v120
    %s123 = scalar_lea.vmem [#allocation0], 8
    %v124 = vld [vmem:[%s123] sm:%s118]
    %s125 = sshllo.u32 0, 1
    %s126 = scalar_lea.vmem %s1, 1
    %127 = vst [vmem:[%s126] sm:%s125] %v124
    %s128 = scalar_lea.vmem [#allocation0], 16
    %v129 = vld [vmem:[%s128] sm:%s118]
    %s130 = sshllo.u32 0, 1
    %s131 = smul.addr 1, 2
    %s132 = scalar_lea.vmem %s1, %s131
    %133 = vst [vmem:[%s132] sm:%s130] %v129

// kernel: conv_batchnorm_prelu.3
$region0: #{conv_batchnorm_prelu.3}
  #allocation0 [shape = 'u32[]', space=smem, size = 0x4, offset = 0x4, fixed_abs, tag = 'smem constant byte address 0x4 - core index']
  #allocation1 [shape = 'u32[144,128]{1,0:T(1,128)}', space=vmem, size = 0x12000, scoped, tag = 'internal scratch']
  %s0 = inlined_call_operand.vmem [shape: bf16[2,8,16,18], index: 0, kind: input, shape index: {}]
  %s1 = inlined_call_operand.vmem [shape: f32[8,1,1], index: 1, kind: input, shape index: {}]
  %s2 = inlined_call_operand.vmem [shape: f32[8,1,1], index: 2, kind: input, shape index: {}]
  %s3 = inlined_call_operand.vmem [shape: f32[8,1,1], index: 3, kind: input, shape index: {}]
  %s4 = inlined_call_operand.hbm [shape: f32[2,8,16,16], index: 4, kind: output, shape index: {}]
  %s5 = sld [smem:[#allocation0]]
  $region49: #{conv_batchnorm_prelu.3} parent=0
    _
  %s7 = ssub.s32 1, %s5
  %s8 = scalar_select 0, %s7, %s5
  $region1: #{conv_batchnorm_prelu.3} parent=0
    #allocation2 [shape = 'u8[131072]{0}', space=vmem, size = 0x20000, scoped, tag = 'output window, operand 0']
    #allocation3 [shape = 's32[2]{0}', space=sflag, size = 0x8, scoped, tag = 'scoped memory for conv_batchnorm_prelu.3']
    %9 = vsyncpa [#allocation3], 0
    %s10 = scalar_lea.sflag [#allocation3], 1
    %11 = vsyncpa %s10, 0
    loop: start=0, step=1, limit=4
    $region2: #{conv_batchnorm_prelu.3} parent=1 // loop_pre_header
      _
    $region3: #{conv_batchnorm_prelu.3} parent=1 // loop_header
      %s13 = sphi 0, %s17
      %p14 = scmp.ge.s32.totalorder %s13, 4
      %s20 = sphi 0, %s32
      %s21 = sphi 0, %s28
      %s22 = sphi 0, %s20
      %s23 = sphi 0, %s21
      %s24 = sphi 0, %s22
      %s25 = sphi 0, %s23
      %s37 = sphi 0, %s39
      %s40 = sphi 0, %s37
      %s41 = sphi 0, %s40
      %s57 = sphi 0, %s41
      %s61 = sphi 0, %s61
      %s63 = sphi 0, %s61
      %s64 = sphi 0, %s63
      %s78 = sphi 0, %s64
      %s82 = sphi 0, %s82
      %s84 = sphi 0, %s82
      %s85 = sphi 0, %s84
      %s99 = sphi 0, %s85
      %s103 = sphi 0, %s103
      %s105 = sphi 0, %s103
      %s106 = sphi 0, %s105
      %s120 = sphi 0, %s106
      %s128 = sphi 0, %s130
      %s131 = sphi 0, %s128
      %s132 = sphi 0, %s131
      %s148 = sphi 0, %s132
    $region4: #{conv_batchnorm_prelu.3} parent=1 // loop_header_branch
      %16 = sbr.rel (%p14) target = $region8
    $region5: #{conv_batchnorm_prelu.3} parent=1 // loop_body
      %s18 = ssub.s32 %s13, 1
      %s19 = ssub.s32 %s13, 2
      %s26 = sadd.s32 1, %s21
      %p27 = scmp.ge.s32.totalorder %s26, 1
      %s28 = scalar_select %p27, 0, %s26
      %s29 = sadd.s32 1, %s20
      %s30 = scalar_select %p27, %s29, %s20
      %p31 = scmp.ge.s32.totalorder %s30, 2
      %s32 = scalar_select %p31, 0, %s30
      %s33 = ssub.s32 %s20, %s32
      %s34 = ssub.s32 %s21, %s28
      %s35 = sor.u32 %s33, %s34
      %p36 = scmp.eq.s32.totalorder %s35, 0
      %s38 = sadd.s32 %s37, 1
      %s39 = scalar_select %p36, %s37, %s38
      %p42 = pneg %p36
      %p43 = scmp.eq.s32.totalorder %s13, 1
      %p44 = por %p42, %p43
      %p45 = scmp.ne.s32.totalorder %s37, %s40
      %p46 = scmp.eq.s32.totalorder %s13, 0
      %p47 = por %p45, %p46
      %p48 = scmp.ne.s32.totalorder %s37, %s40
      %p49 = scmp.eq.s32.totalorder %s18, 1
      %p50 = por %p48, %p49
      %p51 = scmp.ne.s32.totalorder %s40, %s41
      %p52 = scmp.eq.s32.totalorder %s18, 0
      %p53 = por %p51, %p52
      %p54 = scmp.ne.s32.totalorder %s40, %s41
      %p55 = scmp.eq.s32.totalorder %s19, 1
      %p56 = por %p54, %p55
      %p58 = scmp.ne.s32.totalorder %s41, %s57
      %p59 = scmp.eq.s32.totalorder %s19, 0
      %p60 = por %p58, %p59
      %s62 = sadd.s32 %s61, 1
      %p65 = scmp.eq.s32.totalorder %s13, 1
      %p66 = scmp.ne.s32.totalorder %s61, %s63
      %p67 = scmp.eq.s32.totalorder %s13, 0
      %p68 = por %p66, %p67
      %p69 = scmp.ne.s32.totalorder %s61, %s63
      %p70 = scmp.eq.s32.totalorder %s18, 1
      %p71 = por %p69, %p70
      %p72 = scmp.ne.s32.totalorder %s63, %s64
      %p73 = scmp.eq.s32.totalorder %s18, 0
      %p74 = por %p72, %p73
      %p75 = scmp.ne.s32.totalorder %s63, %s64
      %p76 = scmp.eq.s32.totalorder %s19, 1
      %p77 = por %p75, %p76
      %p79 = scmp.ne.s32.totalorder %s64, %s78
      %p80 = scmp.eq.s32.totalorder %s19, 0
      %p81 = por %p79, %p80
      %s83 = sadd.s32 %s82, 1
      %p86 = scmp.eq.s32.totalorder %s13, 1
      %p87 = scmp.ne.s32.totalorder %s82, %s84
      %p88 = scmp.eq.s32.totalorder %s13, 0
      %p89 = por %p87, %p88
      %p90 = scmp.ne.s32.totalorder %s82, %s84
      %p91 = scmp.eq.s32.totalorder %s18, 1
      %p92 = por %p90, %p91
      %p93 = scmp.ne.s32.totalorder %s84, %s85
      %p94 = scmp.eq.s32.totalorder %s18, 0
      %p95 = por %p93, %p94
      %p96 = scmp.ne.s32.totalorder %s84, %s85
      %p97 = scmp.eq.s32.totalorder %s19, 1
      %p98 = por %p96, %p97
      %p100 = scmp.ne.s32.totalorder %s85, %s99
      %p101 = scmp.eq.s32.totalorder %s19, 0
      %p102 = por %p100, %p101
      %s104 = sadd.s32 %s103, 1
      %p107 = scmp.eq.s32.totalorder %s13, 1
      %p108 = scmp.ne.s32.totalorder %s103, %s105
      %p109 = scmp.eq.s32.totalorder %s13, 0
      %p110 = por %p108, %p109
      %p111 = scmp.ne.s32.totalorder %s103, %s105
      %p112 = scmp.eq.s32.totalorder %s18, 1
      %p113 = por %p111, %p112
      %p114 = scmp.ne.s32.totalorder %s105, %s106
      %p115 = scmp.eq.s32.totalorder %s18, 0
      %p116 = por %p114, %p115
      %p117 = scmp.ne.s32.totalorder %s105, %s106
      %p118 = scmp.eq.s32.totalorder %s19, 1
      %p119 = por %p117, %p118
      %p121 = scmp.ne.s32.totalorder %s106, %s120
      %p122 = scmp.eq.s32.totalorder %s19, 0
      %p123 = por %p121, %p122
      %s124 = ssub.s32 %s20, %s32
      %s125 = ssub.s32 %s21, %s28
      %s126 = sor.u32 %s124, %s125
      %p127 = scmp.eq.s32.totalorder %s126, 0
      %s129 = sadd.s32 %s128, 1
      %s130 = scalar_select %p127, %s128, %s129
      %p133 = pneg %p127
      %p134 = scmp.eq.s32.totalorder %s13, 1
      %p135 = por %p133, %p134
      %p136 = scmp.ne.s32.totalorder %s128, %s131
      %p137 = scmp.eq.s32.totalorder %s13, 0
      %p138 = por %p136, %p137
      %p139 = scmp.ne.s32.totalorder %s128, %s131
      %p140 = scmp.eq.s32.totalorder %s18, 1
      %p141 = por %p139, %p140
      %p142 = scmp.ne.s32.totalorder %s131, %s132
      %p143 = scmp.eq.s32.totalorder %s18, 0
      %p144 = por %p142, %p143
      %p145 = scmp.ne.s32.totalorder %s131, %s132
      %p146 = scmp.eq.s32.totalorder %s19, 1
      %p147 = por %p145, %p146
      %p149 = scmp.ne.s32.totalorder %s132, %s148
      %p150 = scmp.eq.s32.totalorder %s19, 0
      %p151 = por %p149, %p150
      %p152 = scmp.le.s32.totalorder 1, %s13
      %p153 = scmp.lt.s32.totalorder %s13, 3
      %p154 = pnand %p152, %p153
      %p155 = pneg %p154
      // Predicated region
      $region9: #{conv_batchnorm_prelu.3} parent=5 // pred_check
        _
      $region10: #{conv_batchnorm_prelu.3} parent=5 // pred_check_branch
        %157 = sbr.rel (%p154) target = $region12
      $region11: #{conv_batchnorm_prelu.3} parent=5 // pred_region
        %s158 = ssub.s32 %s13, 1
        // Predicated region
        $region13: #{conv_batchnorm_prelu.3} parent=11 // pred_check
          %p159 = pneg %p74
        $region14: #{conv_batchnorm_prelu.3} parent=11 // pred_check_branch
          %161 = sbr.rel (%p159) target = $region16
        $region15: #{conv_batchnorm_prelu.3} parent=11 // pred_region
          _
        $region16: #{conv_batchnorm_prelu.3} parent=11 // pred_fallthru
          _
        // Predicated region
        $region17: #{conv_batchnorm_prelu.3} parent=11 // pred_check
          %p162 = pneg %p95
        $region18: #{conv_batchnorm_prelu.3} parent=11 // pred_check_branch
          %164 = sbr.rel (%p162) target = $region20
        $region19: #{conv_batchnorm_prelu.3} parent=11 // pred_region
          _
        $region20: #{conv_batchnorm_prelu.3} parent=11 // pred_fallthru
          _
        // Predicated region
        $region21: #{conv_batchnorm_prelu.3} parent=11 // pred_check
          %p165 = pneg %p116
        $region22: #{conv_batchnorm_prelu.3} parent=11 // pred_check_branch
          %167 = sbr.rel (%p165) target = $region24
        $region23: #{conv_batchnorm_prelu.3} parent=11 // pred_region
          _
        $region24: #{conv_batchnorm_prelu.3} parent=11 // pred_fallthru
          _
      $region12: #{conv_batchnorm_prelu.3} parent=5 // pred_fallthru
        _
      %p168 = scmp.lt.s32.totalorder %s13, 2
      // Predicated region
      $region25: #{conv_batchnorm_prelu.3} parent=5 // pred_check
        %p169 = pneg %p168
      $region26: #{conv_batchnorm_prelu.3} parent=5 // pred_check_branch
        %171 = sbr.rel (%p169) target = $region28
      $region27: #{conv_batchnorm_prelu.3} parent=5 // pred_region
        // Predicated region
        $region29: #{conv_batchnorm_prelu.3} parent=27 // pred_check
          %p172 = pneg %p47
        $region30: #{conv_batchnorm_prelu.3} parent=27 // pred_check_branch
          %174 = sbr.rel (%p172) target = $region32
        $region31: #{conv_batchnorm_prelu.3} parent=27 // pred_region
          %s175 = smul.u32 2, %s21
          %p176 = scmp.lt.s32.totalorder %s20, 1
          %s177 = scalar_select %p176, %s20, 1
          %p178 = scmp.lt.s32.totalorder %s175, 1
          %s179 = scalar_select %p178, %s175, 1
          %s180 = smul.addr %s177, 16
          %s181 = sadd.s32 %s179, %s180
          %s182 = smul.addr %s181, 4
          %s183 = scalar_lea.vmem %s0, %s182
          %s184 = smul.u32 2, %s21
        $region32: #{conv_batchnorm_prelu.3} parent=27 // pred_fallthru
          _
      $region28: #{conv_batchnorm_prelu.3} parent=5 // pred_fallthru
        _
      %p185 = scmp.le.s32.totalorder 1, %s13
      %p186 = scmp.lt.s32.totalorder %s13, 3
      %p187 = pnand %p185, %p186
      %p188 = pneg %p187
      // Predicated region
      $region33: #{conv_batchnorm_prelu.3} parent=5 // pred_check
        _
      $region34: #{conv_batchnorm_prelu.3} parent=5 // pred_check_branch
        %190 = sbr.rel (%p187) target = $region36
      $region35: #{conv_batchnorm_prelu.3} parent=5 // pred_region
        %s191 = ssub.s32 %s13, 1
        %s192 = smul.u32 2, %s23
        %p193 = scmp.lt.s32.totalorder %s22, 1
        %s194 = scalar_select %p193, %s22, 1
        %p195 = scmp.lt.s32.totalorder %s192, 1
        %s196 = scalar_select %p195, %s192, 1
        %s197 = smul.addr %s194, 16
        %s198 = sadd.s32 %s196, %s197
        %s199 = smul.addr %s198, 4
        %s200 = scalar_lea.vmem %s0, %s199
        %p201 = pneg %p53
        %p202 = pneg %p50
        %p203 = pneg %p74
        %p204 = pneg %p71
        %p205 = pneg %p95
        %p206 = pneg %p92
        %p207 = pneg %p116
        %p208 = pneg %p113
        %p209 = pneg %p144
        %p210 = pneg %p141
        %s211 = sand.u32 %s131, 1
        %s212 = scalar_lea.sflag [#allocation3], %s211
        %s213 = sand.u32 %s131, 1
        %s214 = smul.addr %s213, 128
        %s215 = scalar_lea.vmem [#allocation2], %s214
        %s216 = smul.u32 2, %s23
        %p217 = scmp.lt.s32.totalorder %s22, 1
        %s218 = scalar_select %p217, %s22, 1
        %p219 = scmp.lt.s32.totalorder %s216, 1
        %s220 = scalar_select %p219, %s216, 1
        %s221 = smul.addr %s218, 16
        %s222 = sadd.s32 %s220, %s221
        %s223 = smul.addr %s222, 4
        %s224 = scalar_lea.vmem %s0, %s223
        %s225 = smul.u32 2, %s23
        %s226 = smul.u32 2, %s23
        %v227 = vld [vmem:[%s224] sm:$0xf]
        %v228 = vld [vmem:[%s224 + $0x4] sm:$0xf]
        %v229 = vld [vmem:[%s224 + $0x8] sm:$0xf]
        %v230 = vld [vmem:[%s224 + $0xc] sm:$0xf]
        %v231 = vld [vmem:[%s224 + $0x10] sm:$0xf]
        %v232 = vld [vmem:[%s224 + $0x14] sm:$0xf]
        %v233 = vld [vmem:[%s224 + $0x18] sm:$0xf]
        %v234 = vld [vmem:[%s224 + $0x1c] sm:$0xf]
        %v235 = vld [vmem:[%s224 + $0x20] sm:$0xf]
        %v236 = vld [vmem:[%s224 + $0x24] sm:$0xf]
        %v237 = vld [vmem:[%s224 + $0x28] sm:$0xf]
        %v238 = vld [vmem:[%s224 + $0x2c] sm:$0xf]
        %v239 = vld [vmem:[%s224 + $0x30] sm:$0xf]
        %v240 = vld [vmem:[%s224 + $0x34] sm:$0xf]
        %v241 = vld [vmem:[%s224 + $0x38] sm:$0xf]
        %v242 = vld [vmem:[%s224 + $0x3c] sm:$0xf]
        %v243 = vunpack.c.l.bf16 %v227
        %v244 = vunpack.c.l.bf16 %v228
        %v245 = vunpack.c.l.bf16 %v229
        %v246 = vunpack.c.l.bf16 %v230
        %v247 = vunpack.c.l.bf16 %v231
        %v248 = vunpack.c.l.bf16 %v232
        %v249 = vunpack.c.l.bf16 %v233
        %v250 = vunpack.c.l.bf16 %v234
        %v251 = vunpack.c.l.bf16 %v235
        %v252 = vunpack.c.l.bf16 %v236
        %v253 = vunpack.c.l.bf16 %v237
        %v254 = vunpack.c.l.bf16 %v238
        %v255 = vunpack.c.l.bf16 %v239
        %v256 = vunpack.c.l.bf16 %v240
        %v257 = vunpack.c.l.bf16 %v241
        %v258 = vunpack.c.l.bf16 %v242
        %v259 = vld [vmem:[%s1] sm:$0x1]
        %v260 = vld [vmem:[%s1 + $0x1] sm:$0x1]
        %v261 = vld [vmem:[%s1 + $0x2] sm:$0x1]
        %v262 = vld [vmem:[%s1 + $0x3] sm:$0x1]
        %v263 = vld [vmem:[%s1 + $0x4] sm:$0x1]
        %v264 = vld [vmem:[%s1 + $0x5] sm:$0x1]
        %v265 = vld [vmem:[%s1 + $0x6] sm:$0x1]
        %v266 = vld [vmem:[%s1 + $0x7] sm:$0x1]
        %v275 = vlaneseq
        %v276 = vshrl.u32 %v275, 7
        %v277 = vsub.s32 0, %v276
        %v278 = vrot.slane %v259, %v277
        %v279 = vlaneseq
        %v280 = vshrl.u32 %v279, 7
        %v281 = vsub.s32 0, %v280
        %v282 = vrot.slane %v260, %v281
        %v283 = vlaneseq
        %v284 = vshrl.u32 %v283, 7
        %v285 = vsub.s32 0, %v284
        %v286 = vrot.slane %v261, %v285
        %v287 = vlaneseq
        %v288 = vshrl.u32 %v287, 7
        %v289 = vsub.s32 0, %v288
        %v290 = vrot.slane %v262, %v289
        %v291 = vlaneseq
        %v292 = vshrl.u32 %v291, 7
        %v293 = vsub.s32 0, %v292
        %v294 = vrot.slane %v263, %v293
        %v295 = vlaneseq
        %v296 = vshrl.u32 %v295, 7
        %v297 = vsub.s32 0, %v296
        %v298 = vrot.slane %v264, %v297
        %v299 = vlaneseq
        %v300 = vshrl.u32 %v299, 7
        %v301 = vsub.s32 0, %v300
        %v302 = vrot.slane %v265, %v301
        %v303 = vlaneseq
        %v304 = vshrl.u32 %v303, 7
        %v305 = vsub.s32 0, %v304
        %v306 = vrot.slane %v266, %v305
        %307 = vset.pattern.permute.xlu0 0
        %308 = vperm.xlu0 %307, %v278
        %v309 = vpop.permute.xlu0 %308
        %311 = vset.pattern.permute.xlu0 0
        %312 = vperm.xlu0 %311, %v282
        %v313 = vpop.permute.xlu0 %312
        %315 = vset.pattern.permute.xlu0 0
        %316 = vperm.xlu0 %315, %v286
        %v317 = vpop.permute.xlu0 %316
        %319 = vset.pattern.permute.xlu0 0
        %320 = vperm.xlu0 %319, %v290
        %v321 = vpop.permute.xlu0 %320
        %323 = vset.pattern.permute.xlu0 0
        %324 = vperm.xlu0 %323, %v294
        %v325 = vpop.permute.xlu0 %324
        %327 = vset.pattern.permute.xlu0 0
        %328 = vperm.xlu0 %327, %v298
        %v329 = vpop.permute.xlu0 %328
        %331 = vset.pattern.permute.xlu0 0
        %332 = vperm.xlu0 %331, %v302
        %v333 = vpop.permute.xlu0 %332
        %335 = vset.pattern.permute.xlu0 0
        %336 = vperm.xlu0 %335, %v306
        %v337 = vpop.permute.xlu0 %336
        %v339 = vmul.f32 %v243, %v309
        %v340 = vmul.f32 %v244, %v309
        %v341 = vmul.f32 %v245, %v313
        %v342 = vmul.f32 %v246, %v313
        %v343 = vmul.f32 %v247, %v317
        %v344 = vmul.f32 %v248, %v317
        %v345 = vmul.f32 %v249, %v321
        %v346 = vmul.f32 %v250, %v321
        %v347 = vmul.f32 %v251, %v325
        %v348 = vmul.f32 %v252, %v325
        %v349 = vmul.f32 %v253, %v329
        %v350 = vmul.f32 %v254, %v329
        %v351 = vmul.f32 %v255, %v333
        %v352 = vmul.f32 %v256, %v333
        %v353 = vmul.f32 %v257, %v337
        %v354 = vmul.f32 %v258, %v337
        %v355 = vld [vmem:[%s2] sm:$0x1]
        %v356 = vld [vmem:[%s2 + $0x1] sm:$0x1]
        %v357 = vld [vmem:[%s2 + $0x2] sm:$0x1]
        %v358 = vld [vmem:[%s2 + $0x3] sm:$0x1]
        %v359 = vld [vmem:[%s2 + $0x4] sm:$0x1]
        %v360 = vld [vmem:[%s2 + $0x5] sm:$0x1]
        %v361 = vld [vmem:[%s2 + $0x6] sm:$0x1]
        %v362 = vld [vmem:[%s2 + $0x7] sm:$0x1]
        %v371 = vlaneseq
        %v372 = vshrl.u32 %v371, 7
        %v373 = vsub.s32 0, %v372
        %v374 = vrot.slane %v355, %v373
        %v375 = vlaneseq
        %v376 = vshrl.u32 %v375, 7
        %v377 = vsub.s32 0, %v376
        %v378 = vrot.slane %v356, %v377
        %v379 = vlaneseq
        %v380 = vshrl.u32 %v379, 7
        %v381 = vsub.s32 0, %v380
        %v382 = vrot.slane %v357, %v381
        %v383 = vlaneseq
        %v384 = vshrl.u32 %v383, 7
        %v385 = vsub.s32 0, %v384
        %v386 = vrot.slane %v358, %v385
        %v387 = vlaneseq
        %v388 = vshrl.u32 %v387, 7
        %v389 = vsub.s32 0, %v388
        %v390 = vrot.slane %v359, %v389
        %v391 = vlaneseq
        %v392 = vshrl.u32 %v391, 7
        %v393 = vsub.s32 0, %v392
        %v394 = vrot.slane %v360, %v393
        %v395 = vlaneseq
        %v396 = vshrl.u32 %v395, 7
        %v397 = vsub.s32 0, %v396
        %v398 = vrot.slane %v361, %v397
        %v399 = vlaneseq
        %v400 = vshrl.u32 %v399, 7
        %v401 = vsub.s32 0, %v400
        %v402 = vrot.slane %v362, %v401
        %403 = vset.pattern.permute.xlu0 0
        %404 = vperm.xlu0 %403, %v374
        %v405 = vpop.permute.xlu0 %404
        %407 = vset.pattern.permute.xlu0 0
        %408 = vperm.xlu0 %407, %v378
        %v409 = vpop.permute.xlu0 %408
        %411 = vset.pattern.permute.xlu0 0
        %412 = vperm.xlu0 %411, %v382
        %v413 = vpop.permute.xlu0 %412
        %415 = vset.pattern.permute.xlu0 0
        %416 = vperm.xlu0 %415, %v386
        %v417 = vpop.permute.xlu0 %416
        %419 = vset.pattern.permute.xlu0 0
        %420 = vperm.xlu0 %419, %v390
        %v421 = vpop.permute.xlu0 %420
        %423 = vset.pattern.permute.xlu0 0
        %424 = vperm.xlu0 %423, %v394
        %v425 = vpop.permute.xlu0 %424
        %427 = vset.pattern.permute.xlu0 0
        %428 = vperm.xlu0 %427, %v398
        %v429 = vpop.permute.xlu0 %428
        %431 = vset.pattern.permute.xlu0 0
        %432 = vperm.xlu0 %431, %v402
        %v433 = vpop.permute.xlu0 %432
        %v435 = vadd.f32 %v339, %v405
        %v436 = vadd.f32 %v340, %v405
        %v437 = vadd.f32 %v341, %v409
        %v438 = vadd.f32 %v342, %v409
        %v439 = vadd.f32 %v343, %v413
        %v440 = vadd.f32 %v344, %v413
        %v441 = vadd.f32 %v345, %v417
        %v442 = vadd.f32 %v346, %v417
        %v443 = vadd.f32 %v347, %v421
        %v444 = vadd.f32 %v348, %v421
        %v445 = vadd.f32 %v349, %v425
        %v446 = vadd.f32 %v350, %v425
        %v447 = vadd.f32 %v351, %v429
        %v448 = vadd.f32 %v352, %v429
        %v449 = vadd.f32 %v353, %v433
        %v450 = vadd.f32 %v354, %v433
        %vm451 = vcmp.gt.f32.partialorder %v435, 0.0
        %vm452 = vcmp.gt.f32.partialorder %v436, 0.0
        %vm453 = vcmp.gt.f32.partialorder %v437, 0.0
        %vm454 = vcmp.gt.f32.partialorder %v438, 0.0
        %vm455 = vcmp.gt.f32.partialorder %v439, 0.0
        %vm456 = vcmp.gt.f32.partialorder %v440, 0.0
        %vm457 = vcmp.gt.f32.partialorder %v441, 0.0
        %vm458 = vcmp.gt.f32.partialorder %v442, 0.0
        %vm459 = vcmp.gt.f32.partialorder %v443, 0.0
        %vm460 = vcmp.gt.f32.partialorder %v444, 0.0
        %vm461 = vcmp.gt.f32.partialorder %v445, 0.0
        %vm462 = vcmp.gt.f32.partialorder %v446, 0.0
        %vm463 = vcmp.gt.f32.partialorder %v447, 0.0
        %vm464 = vcmp.gt.f32.partialorder %v448, 0.0
        %vm465 = vcmp.gt.f32.partialorder %v449, 0.0
        %vm466 = vcmp.gt.f32.partialorder %v450, 0.0
        %v467 = vld [vmem:[%s3] sm:$0x1]
        %v468 = vld [vmem:[%s3 + $0x1] sm:$0x1]
        %v469 = vld [vmem:[%s3 + $0x2] sm:$0x1]
        %v470 = vld [vmem:[%s3 + $0x3] sm:$0x1]
        %v471 = vld [vmem:[%s3 + $0x4] sm:$0x1]
        %v472 = vld [vmem:[%s3 + $0x5] sm:$0x1]
        %v473 = vld [vmem:[%s3 + $0x6] sm:$0x1]
        %v474 = vld [vmem:[%s3 + $0x7] sm:$0x1]
        %v483 = vlaneseq
        %v484 = vshrl.u32 %v483, 7
        %v485 = vsub.s32 0, %v484
        %v486 = vrot.slane %v467, %v485
        %v487 = vlaneseq
        %v488 = vshrl.u32 %v487, 7
        %v489 = vsub.s32 0, %v488
        %v490 = vrot.slane %v468, %v489
        %v491 = vlaneseq
        %v492 = vshrl.u32 %v491, 7
        %v493 = vsub.s32 0, %v492
        %v494 = vrot.slane %v469, %v493
        %v495 = vlaneseq
        %v496 = vshrl.u32 %v495, 7
        %v497 = vsub.s32 0, %v496
        %v498 = vrot.slane %v470, %v497
        %v499 = vlaneseq
        %v500 = vshrl.u32 %v499, 7
        %v501 = vsub.s32 0, %v500
        %v502 = vrot.slane %v471, %v501
        %v503 = vlaneseq
        %v504 = vshrl.u32 %v503, 7
        %v505 = vsub.s32 0, %v504
        %v506 = vrot.slane %v472, %v505
        %v507 = vlaneseq
        %v508 = vshrl.u32 %v507, 7
        %v509 = vsub.s32 0, %v508
        %v510 = vrot.slane %v473, %v509
        %v511 = vlaneseq
        %v512 = vshrl.u32 %v511, 7
        %v513 = vsub.s32 0, %v512
        %v514 = vrot.slane %v474, %v513
        %515 = vset.pattern.permute.xlu0 0
        %516 = vperm.xlu0 %515, %v486
        %v517 = vpop.permute.xlu0 %516
        %519 = vset.pattern.permute.xlu0 0
        %520 = vperm.xlu0 %519, %v490
        %v521 = vpop.permute.xlu0 %520
        %523 = vset.pattern.permute.xlu0 0
        %524 = vperm.xlu0 %523, %v494
        %v525 = vpop.permute.xlu0 %524
        %527 = vset.pattern.permute.xlu0 0
        %528 = vperm.xlu0 %527, %v498
        %v529 = vpop.permute.xlu0 %528
        %531 = vset.pattern.permute.xlu0 0
        %532 = vperm.xlu0 %531, %v502
        %v533 = vpop.permute.xlu0 %532
        %535 = vset.pattern.permute.xlu0 0
        %536 = vperm.xlu0 %535, %v506
        %v537 = vpop.permute.xlu0 %536
        %539 = vset.pattern.permute.xlu0 0
        %540 = vperm.xlu0 %539, %v510
        %v541 = vpop.permute.xlu0 %540
        %543 = vset.pattern.permute.xlu0 0
        %544 = vperm.xlu0 %543, %v514
        %v545 = vpop.permute.xlu0 %544
        %v547 = vmul.f32 %v435, %v517
        %v548 = vmul.f32 %v436, %v517
        %v549 = vmul.f32 %v437, %v521
        %v550 = vmul.f32 %v438, %v521
        %v551 = vmul.f32 %v439, %v525
        %v552 = vmul.f32 %v440, %v525
        %v553 = vmul.f32 %v441, %v529
        %v554 = vmul.f32 %v442, %v529
        %v555 = vmul.f32 %v443, %v533
        %v556 = vmul.f32 %v444, %v533
        %v557 = vmul.f32 %v445, %v537
        %v558 = vmul.f32 %v446, %v537
        %v559 = vmul.f32 %v447, %v541
        %v560 = vmul.f32 %v448, %v541
        %v561 = vmul.f32 %v449, %v545
        %v562 = vmul.f32 %v450, %v545
        %v563 = vsel %vm451, %v435, %v547
        %v564 = vsel %vm452, %v436, %v548
        %v565 = vsel %vm453, %v437, %v549
        %v566 = vsel %vm454, %v438, %v550
        %v567 = vsel %vm455, %v439, %v551
        %v568 = vsel %vm456, %v440, %v552
        %v569 = vsel %vm457, %v441, %v553
        %v570 = vsel %vm458, %v442, %v554
        %v571 = vsel %vm459, %v443, %v555
        %v572 = vsel %vm460, %v444, %v556
        %v573 = vsel %vm461, %v445, %v557
        %v574 = vsel %vm462, %v446, %v558
        %v575 = vsel %vm463, %v447, %v559
        %v576 = vsel %vm464, %v448, %v560
        %v577 = vsel %vm465, %v449, %v561
        %v578 = vsel %vm466, %v450, %v562
        %vm579 = vcmask 130048
        %580 = vst.msk [vmem:[%s215] sm:$0xff] %vm579, %v563
        %581 = vst.msk [vmem:[%s215 + $0x8] sm:$0xff] %vm579, %v564
        %582 = vst.msk [vmem:[%s215 + $0x10] sm:$0xff] %vm579, %v565
        %583 = vst.msk [vmem:[%s215 + $0x18] sm:$0xff] %vm579, %v566
        %584 = vst.msk [vmem:[%s215 + $0x20] sm:$0xff] %vm579, %v567
        %585 = vst.msk [vmem:[%s215 + $0x28] sm:$0xff] %vm579, %v568
        %586 = vst.msk [vmem:[%s215 + $0x30] sm:$0xff] %vm579, %v569
        %587 = vst.msk [vmem:[%s215 + $0x38] sm:$0xff] %vm579, %v570
        %588 = vst.msk [vmem:[%s215 + $0x40] sm:$0xff] %vm579, %v571
        %589 = vst.msk [vmem:[%s215 + $0x48] sm:$0xff] %vm579, %v572
        %590 = vst.msk [vmem:[%s215 + $0x50] sm:$0xff] %vm579, %v573
        %591 = vst.msk [vmem:[%s215 + $0x58] sm:$0xff] %vm579, %v574
        %592 = vst.msk [vmem:[%s215 + $0x60] sm:$0xff] %vm579, %v575
        %593 = vst.msk [vmem:[%s215 + $0x68] sm:$0xff] %vm579, %v576
        %594 = vst.msk [vmem:[%s215 + $0x70] sm:$0xff] %vm579, %v577
        %595 = vst.msk [vmem:[%s215 + $0x78] sm:$0xff] %vm579, %v578
        %s596 = sand.u32 %s131, 1
        %s597 = scalar_lea.sflag [#allocation3], %s596
        %s598 = sand.u32 %s131, 1
        %s599 = smul.addr %s598, 128
        %s600 = scalar_lea.vmem [#allocation2], %s599
        // Predicated region
        $region37: #{conv_batchnorm_prelu.3} parent=35 // pred_check
          %p601 = pneg %p141
        $region38: #{conv_batchnorm_prelu.3} parent=35 // pred_check_branch
          %603 = sbr.rel (%p601) target = $region40
        $region39: #{conv_batchnorm_prelu.3} parent=35 // pred_region
          %s604 = smul.u32 2, %s23
          %s606 = ssub.s32 2048, 2048
          %607 = vsyncadd %s597, %s606
          %s608 = smul.addr %s22, 16
          %s609 = sadd.s32 %s604, %s608
          %s610 = smul.addr %s609, 128
          %s611 = scalar_lea.hbm %s4, %s610
          %s612 = sshll.u32 %s600, 4
          %s613 = int_to_ptr.vmem [resolvable:$true] %s612
          %618 = dma.vmem_to_hbm [thread:$0]  %s613, 2048, %s611, %s597, 128, 128, 8
        $region40: #{conv_batchnorm_prelu.3} parent=35 // pred_fallthru
          _
      $region36: #{conv_batchnorm_prelu.3} parent=5 // pred_fallthru
        _
      %p619 = scmp.le.s32.totalorder 2, %s13
      // Predicated region
      $region41: #{conv_batchnorm_prelu.3} parent=5 // pred_check
        %p620 = pneg %p619
      $region42: #{conv_batchnorm_prelu.3} parent=5 // pred_check_branch
        %622 = sbr.rel (%p620) target = $region44
      $region43: #{conv_batchnorm_prelu.3} parent=5 // pred_region
        %s623 = ssub.s32 %s13, 2
        // Predicated region
        $region45: #{conv_batchnorm_prelu.3} parent=43 // pred_check
          %p624 = pneg %p147
        $region46: #{conv_batchnorm_prelu.3} parent=43 // pred_check_branch
          %626 = sbr.rel (%p624) target = $region48
        $region47: #{conv_batchnorm_prelu.3} parent=43 // pred_region
          %s627 = sand.u32 %s132, 1
          %s628 = scalar_lea.sflag [#allocation3], %s627
          %s629 = sand.u32 %s132, 1
          %s630 = smul.addr %s629, 128
          %s631 = scalar_lea.vmem [#allocation2], %s630
          %632 = dma.done %s628, 2048
        $region48: #{conv_batchnorm_prelu.3} parent=43 // pred_fallthru
          _
      $region44: #{conv_batchnorm_prelu.3} parent=5 // pred_fallthru
        _
    $region6: #{conv_batchnorm_prelu.3} parent=1 // loop_footer
      %s17 = sadd.s32 1, %s13
    $region7: #{conv_batchnorm_prelu.3} parent=1 // loop_footer_branch
      %12 = sbr.rel target = $region3
    $region8: #{conv_batchnorm_prelu.3} parent=1 // loop_exit
      _
    %633 = vsyncpa [#allocation3], 1
    %s634 = scalar_lea.sflag [#allocation3], 1
    %635 = vsyncpa %s634, 1

// kernel: conv_batchnorm_prelu.2
$region0: #{conv_batchnorm_prelu.2}
  #allocation0 [shape = 'u32[]', space=smem, size = 0x4, offset = 0x4, fixed_abs, tag = 'smem constant byte address 0x4 - core index']
  #allocation1 [shape = 'u32[144,128]{1,0:T(1,128)}', space=vmem, size = 0x12000, scoped, tag = 'internal scratch']
  #allocation2 [shape = 'bf16[36,288]{1,0:T(8,128)(2,1)}', space=vmem, size = 0x7800, scoped, tag = 'scratch operand']
  %s0 = inlined_call_operand.vmem [shape: f32[1,288], index: 0, kind: input, shape index: {}]
  %s1 = inlined_call_operand.vmem [shape: bf16[2,4,342], index: 1, kind: input, shape index: {}]
  %s2 = inlined_call_operand.vmem [shape: bf16[8,36], index: 2, kind: input, shape index: {}]
  %s3 = inlined_call_operand.vmem [shape: bf16[2,8,288], index: 3, kind: output, shape index: {0}]
  %s4 = inlined_call_operand.vmem [shape: f32[2,8,1], index: 4, kind: output, shape index: {1}]
  %s5 = inlined_call_operand.vmem [shape: f32[2,8,1], index: 5, kind: output, shape index: {2}]
  %6 = xla_tuple %s3, %s4, %s5
  %s7 = sld [smem:[#allocation0]]
  $region65: #{conv_batchnorm_prelu.2} parent=0
    _
  %s9 = ssub.s32 1, %s7
  %s10 = scalar_select 0, %s9, %s7
  loop: start=0, step=1, limit=4
  $region2: #{conv_batchnorm_prelu.2} parent=0 // loop_pre_header
    _
  $region3: #{conv_batchnorm_prelu.2} parent=0 // loop_header
    %s12 = sphi 0, %s16
    %p13 = scmp.ge.s32.totalorder %s12, 4
    %s19 = sphi 0, %s31
    %s20 = sphi 0, %s27
    %s21 = sphi 0, %s19
    %s22 = sphi 0, %s20
    %s23 = sphi 0, %s21
    %s24 = sphi 0, %s22
    %s32 = sphi 0, %s32
    %s34 = sphi 0, %s32
    %s35 = sphi 0, %s34
    %s49 = sphi 0, %s35
    %s55 = sphi 0, %s57
    %s58 = sphi 0, %s55
    %s59 = sphi 0, %s58
    %s75 = sphi 0, %s59
    %s79 = sphi 0, %s79
    %s81 = sphi 0, %s79
    %s82 = sphi 0, %s81
    %s96 = sphi 0, %s82
    %s104 = sphi 0, %s106
    %s107 = sphi 0, %s104
    %s108 = sphi 0, %s107
    %s124 = sphi 0, %s108
    %s130 = sphi 0, %s132
    %s133 = sphi 0, %s130
    %s134 = sphi 0, %s133
    %s150 = sphi 0, %s134
    %s156 = sphi 0, %s158
    %s159 = sphi 0, %s156
    %s160 = sphi 0, %s159
    %s176 = sphi 0, %s160
  $region4: #{conv_batchnorm_prelu.2} parent=0 // loop_header_branch
    %15 = sbr.rel (%p13) target = $region8
  $region5: #{conv_batchnorm_prelu.2} parent=0 // loop_body
    %s17 = ssub.s32 %s12, 1
    %s18 = ssub.s32 %s12, 2
    %s25 = sadd.s32 1, %s20
    %p26 = scmp.ge.s32.totalorder %s25, 1
    %s27 = scalar_select %p26, 0, %s25
    %s28 = sadd.s32 1, %s19
    %s29 = scalar_select %p26, %s28, %s19
    %p30 = scmp.ge.s32.totalorder %s29, 2
    %s31 = scalar_select %p30, 0, %s29
    %s33 = sadd.s32 %s32, 1
    %p36 = scmp.eq.s32.totalorder %s12, 1
    %p37 = scmp.ne.s32.totalorder %s32, %s34
    %p38 = scmp.eq.s32.totalorder %s12, 0
    %p39 = por %p37, %p38
    %p40 = scmp.ne.s32.totalorder %s32, %s34
    %p41 = scmp.eq.s32.totalorder %s17, 1
    %p42 = por %p40, %p41
    %p43 = scmp.ne.s32.totalorder %s34, %s35
    %p44 = scmp.eq.s32.totalorder %s17, 0
    %p45 = por %p43, %p44
    %p46 = scmp.ne.s32.totalorder %s34, %s35
    %p47 = scmp.eq.s32.totalorder %s18, 1
    %p48 = por %p46, %p47
    %p50 = scmp.ne.s32.totalorder %s35, %s49
    %p51 = scmp.eq.s32.totalorder %s18, 0
    %p52 = por %p50, %p51
    %s53 = ssub.s32 %s19, %s31
    %p54 = scmp.eq.s32.totalorder %s53, 0
    %s56 = sadd.s32 %s55, 1
    %s57 = scalar_select %p54, %s55, %s56
    %p60 = pneg %p54
    %p61 = scmp.eq.s32.totalorder %s12, 1
    %p62 = por %p60, %p61
    %p63 = scmp.ne.s32.totalorder %s55, %s58
    %p64 = scmp.eq.s32.totalorder %s12, 0
    %p65 = por %p63, %p64
    %p66 = scmp.ne.s32.totalorder %s55, %s58
    %p67 = scmp.eq.s32.totalorder %s17, 1
    %p68 = por %p66, %p67
    %p69 = scmp.ne.s32.totalorder %s58, %s59
    %p70 = scmp.eq.s32.totalorder %s17, 0
    %p71 = por %p69, %p70
    %p72 = scmp.ne.s32.totalorder %s58, %s59
    %p73 = scmp.eq.s32.totalorder %s18, 1
    %p74 = por %p72, %p73
    %p76 = scmp.ne.s32.totalorder %s59, %s75
    %p77 = scmp.eq.s32.totalorder %s18, 0
    %p78 = por %p76, %p77
    %s80 = sadd.s32 %s79, 1
    %p83 = scmp.eq.s32.totalorder %s12, 1
    %p84 = scmp.ne.s32.totalorder %s79, %s81
    %p85 = scmp.eq.s32.totalorder %s12, 0
    %p86 = por %p84, %p85
    %p87 = scmp.ne.s32.totalorder %s79, %s81
    %p88 = scmp.eq.s32.totalorder %s17, 1
    %p89 = por %p87, %p88
    %p90 = scmp.ne.s32.totalorder %s81, %s82
    %p91 = scmp.eq.s32.totalorder %s17, 0
    %p92 = por %p90, %p91
    %p93 = scmp.ne.s32.totalorder %s81, %s82
    %p94 = scmp.eq.s32.totalorder %s18, 1
    %p95 = por %p93, %p94
    %p97 = scmp.ne.s32.totalorder %s82, %s96
    %p98 = scmp.eq.s32.totalorder %s18, 0
    %p99 = por %p97, %p98
    %s100 = ssub.s32 %s19, %s31
    %s101 = ssub.s32 %s20, %s27
    %s102 = sor.u32 %s100, %s101
    %p103 = scmp.eq.s32.totalorder %s102, 0
    %s105 = sadd.s32 %s104, 1
    %s106 = scalar_select %p103, %s104, %s105
    %p109 = pneg %p103
    %p110 = scmp.eq.s32.totalorder %s12, 1
    %p111 = por %p109, %p110
    %p112 = scmp.ne.s32.totalorder %s104, %s107
    %p113 = scmp.eq.s32.totalorder %s12, 0
    %p114 = por %p112, %p113
    %p115 = scmp.ne.s32.totalorder %s104, %s107
    %p116 = scmp.eq.s32.totalorder %s17, 1
    %p117 = por %p115, %p116
    %p118 = scmp.ne.s32.totalorder %s107, %s108
    %p119 = scmp.eq.s32.totalorder %s17, 0
    %p120 = por %p118, %p119
    %p121 = scmp.ne.s32.totalorder %s107, %s108
    %p122 = scmp.eq.s32.totalorder %s18, 1
    %p123 = por %p121, %p122
    %p125 = scmp.ne.s32.totalorder %s108, %s124
    %p126 = scmp.eq.s32.totalorder %s18, 0
    %p127 = por %p125, %p126
    %s128 = ssub.s32 %s19, %s31
    %p129 = scmp.eq.s32.totalorder %s128, 0
    %s131 = sadd.s32 %s130, 1
    %s132 = scalar_select %p129, %s130, %s131
    %p135 = pneg %p129
    %p136 = scmp.eq.s32.totalorder %s12, 1
    %p137 = por %p135, %p136
    %p138 = scmp.ne.s32.totalorder %s130, %s133
    %p139 = scmp.eq.s32.totalorder %s12, 0
    %p140 = por %p138, %p139
    %p141 = scmp.ne.s32.totalorder %s130, %s133
    %p142 = scmp.eq.s32.totalorder %s17, 1
    %p143 = por %p141, %p142
    %p144 = scmp.ne.s32.totalorder %s133, %s134
    %p145 = scmp.eq.s32.totalorder %s17, 0
    %p146 = por %p144, %p145
    %p147 = scmp.ne.s32.totalorder %s133, %s134
    %p148 = scmp.eq.s32.totalorder %s18, 1
    %p149 = por %p147, %p148
    %p151 = scmp.ne.s32.totalorder %s134, %s150
    %p152 = scmp.eq.s32.totalorder %s18, 0
    %p153 = por %p151, %p152
    %s154 = ssub.s32 %s19, %s31
    %p155 = scmp.eq.s32.totalorder %s154, 0
    %s157 = sadd.s32 %s156, 1
    %s158 = scalar_select %p155, %s156, %s157
    %p161 = pneg %p155
    %p162 = scmp.eq.s32.totalorder %s12, 1
    %p163 = por %p161, %p162
    %p164 = scmp.ne.s32.totalorder %s156, %s159
    %p165 = scmp.eq.s32.totalorder %s12, 0
    %p166 = por %p164, %p165
    %p167 = scmp.ne.s32.totalorder %s156, %s159
    %p168 = scmp.eq.s32.totalorder %s17, 1
    %p169 = por %p167, %p168
    %p170 = scmp.ne.s32.totalorder %s159, %s160
    %p171 = scmp.eq.s32.totalorder %s17, 0
    %p172 = por %p170, %p171
    %p173 = scmp.ne.s32.totalorder %s159, %s160
    %p174 = scmp.eq.s32.totalorder %s18, 1
    %p175 = por %p173, %p174
    %p177 = scmp.ne.s32.totalorder %s160, %s176
    %p178 = scmp.eq.s32.totalorder %s18, 0
    %p179 = por %p177, %p178
    %p180 = scmp.le.s32.totalorder 1, %s12
    %p181 = scmp.lt.s32.totalorder %s12, 3
    %p182 = pnand %p180, %p181
    %p183 = pneg %p182
    // Predicated region
    $region9: #{conv_batchnorm_prelu.2} parent=5 // pred_check
      _
    $region10: #{conv_batchnorm_prelu.2} parent=5 // pred_check_branch
      %185 = sbr.rel (%p182) target = $region12
    $region11: #{conv_batchnorm_prelu.2} parent=5 // pred_region
      %s186 = ssub.s32 %s12, 1
      // Predicated region
      $region13: #{conv_batchnorm_prelu.2} parent=11 // pred_check
        %p187 = pneg %p45
      $region14: #{conv_batchnorm_prelu.2} parent=11 // pred_check_branch
        %189 = sbr.rel (%p187) target = $region16
      $region15: #{conv_batchnorm_prelu.2} parent=11 // pred_region
        _
      $region16: #{conv_batchnorm_prelu.2} parent=11 // pred_fallthru
        _
      // Predicated region
      $region17: #{conv_batchnorm_prelu.2} parent=11 // pred_check
        %p190 = pneg %p92
      $region18: #{conv_batchnorm_prelu.2} parent=11 // pred_check_branch
        %192 = sbr.rel (%p190) target = $region20
      $region19: #{conv_batchnorm_prelu.2} parent=11 // pred_region
        _
      $region20: #{conv_batchnorm_prelu.2} parent=11 // pred_fallthru
        _
    $region12: #{conv_batchnorm_prelu.2} parent=5 // pred_fallthru
      _
    %p193 = scmp.lt.s32.totalorder %s12, 2
    // Predicated region
    $region21: #{conv_batchnorm_prelu.2} parent=5 // pred_check
      %p194 = pneg %p193
    $region22: #{conv_batchnorm_prelu.2} parent=5 // pred_check_branch
      %196 = sbr.rel (%p194) target = $region24
    $region23: #{conv_batchnorm_prelu.2} parent=5 // pred_region
      // Predicated region
      $region25: #{conv_batchnorm_prelu.2} parent=23 // pred_check
        %p197 = pneg %p65
      $region26: #{conv_batchnorm_prelu.2} parent=23 // pred_check_branch
        %199 = sbr.rel (%p197) target = $region28
      $region27: #{conv_batchnorm_prelu.2} parent=23 // pred_region
        %p200 = scmp.lt.s32.totalorder %s19, 1
        %s201 = scalar_select %p200, %s19, 1
        %s202 = smul.addr %s201, 3
        %s203 = smul.addr %s202, 2
        %s204 = scalar_lea.vmem %s1, %s203
      $region28: #{conv_batchnorm_prelu.2} parent=23 // pred_fallthru
        _
    $region24: #{conv_batchnorm_prelu.2} parent=5 // pred_fallthru
      _
    %p205 = scmp.le.s32.totalorder 1, %s12
    %p206 = scmp.lt.s32.totalorder %s12, 3
    %p207 = pnand %p205, %p206
    %p208 = pneg %p207
    // Predicated region
    $region29: #{conv_batchnorm_prelu.2} parent=5 // pred_check
      _
    $region30: #{conv_batchnorm_prelu.2} parent=5 // pred_check_branch
      %210 = sbr.rel (%p207) target = $region32
    $region31: #{conv_batchnorm_prelu.2} parent=5 // pred_region
      %s211 = ssub.s32 %s12, 1
      %p212 = pneg %p45
      %p213 = pneg %p42
      %p214 = scmp.lt.s32.totalorder %s21, 1
      %s215 = scalar_select %p214, %s21, 1
      %s216 = smul.addr %s215, 3
      %s217 = smul.addr %s216, 2
      %s218 = scalar_lea.vmem %s1, %s217
      %p219 = pneg %p71
      %p220 = pneg %p68
      %p221 = pneg %p92
      %p222 = pneg %p89
      %p223 = pneg %p120
      %p224 = pneg %p117
      %s225 = smul.u32 3, %s22
      %p226 = scmp.lt.s32.totalorder %s21, 1
      %s227 = scalar_select %p226, %s21, 1
      %p228 = scmp.lt.s32.totalorder %s225, 2
      %s229 = scalar_select %p228, %s225, 2
      %s230 = smul.addr %s227, 3
      %s231 = sadd.s32 %s229, %s230
      %s232 = smul.addr %s231, 4
      %s233 = scalar_lea.vmem %s3, %s232
      %p234 = pneg %p146
      %p235 = pneg %p143
      %p236 = scmp.lt.s32.totalorder %s21, 1
      %s237 = scalar_select %p236, %s21, 1
      %s238 = smul.addr %s237, 8
      %s239 = scalar_lea.vmem %s4, %s238
      %p240 = pneg %p172
      %p241 = pneg %p169
      %p242 = scmp.lt.s32.totalorder %s21, 1
      %s243 = scalar_select %p242, %s21, 1
      %s244 = smul.addr %s243, 8
      %s245 = scalar_lea.vmem %s5, %s244
      %p246 = scmp.lt.s32.totalorder %s21, 1
      %s247 = scalar_select %p246, %s21, 1
      %s248 = smul.addr %s247, 3
      %s249 = smul.addr %s248, 2
      %s250 = scalar_lea.vmem %s1, %s249
      %s251 = smul.u32 3, %s22
      %p252 = scmp.lt.s32.totalorder %s21, 1
      %s253 = scalar_select %p252, %s21, 1
      %p254 = scmp.lt.s32.totalorder %s251, 2
      %s255 = scalar_select %p254, %s251, 2
      %s256 = smul.addr %s253, 3
      %s257 = sadd.s32 %s255, %s256
      %s258 = smul.addr %s257, 4
      %s259 = scalar_lea.vmem %s3, %s258
      %s260 = smul.u32 3, %s22
      %p261 = scmp.lt.s32.totalorder %s21, 1
      %s262 = scalar_select %p261, %s21, 1
      %s263 = smul.addr %s262, 8
      %s264 = scalar_lea.vmem %s4, %s263
      %p265 = scmp.lt.s32.totalorder %s21, 1
      %s266 = scalar_select %p265, %s21, 1
      %s267 = smul.addr %s266, 8
      %s268 = scalar_lea.vmem %s5, %s267
      %p270 = scmp.eq.s32.totalorder %s22, 0
      // Predicated region
      $region33: #{conv_batchnorm_prelu.2} parent=31 // pred_check
        %p271 = pneg %p270
      $region34: #{conv_batchnorm_prelu.2} parent=31 // pred_check_branch
        %273 = sbr.rel (%p271) target = $region36
      $region35: #{conv_batchnorm_prelu.2} parent=31 // pred_region
        %vm274 = vcmask 7168
        %275 = vst.msk [vmem:[%s264] sm:$0xff] %vm274, 0.0
        %276 = vst.msk [vmem:[%s268] sm:$0xff] %vm274, 0.0
      $region36: #{conv_batchnorm_prelu.2} parent=31 // pred_fallthru
        _
      %v277 = vld [vmem:[%s250] sm:$0x3f]
      %v279 = vcombine.high %v277, %v277
      %v281 = vunpack.c.l.s4 1983009808
      %v282 = vunpack.c.0.s8 %v281
      %v283 = vlaneseq
      %v284 = vshrl.u32 %v283, 7
      %v285 = vsub.s32 %v282, %v284
      %v286 = vrot.slane %v277, %v285
      %v288 = vunpack.c.l.s4 1983009808
      %v289 = vunpack.c.0.s8 %v288
      %v290 = vlaneseq
      %v291 = vshrl.u32 %v290, 7
      %v292 = vsub.s32 %v289, %v291
      %v293 = vrot.slane %v279, %v292
      %296 = vst [vmem:[#allocation2] sm:$0x33] %v286
      %vm297 = vcmask 254976
      %298 = vst.msk [vmem:[#allocation2 + $0x8] sm:$0x3] %vm297, %v293
      %v299 = vld [vmem:[%s250] sm:$0x3f]
      %v301 = vcombine.low %v299, %v299
      %v303 = vunpack.c.l.s4 1983009808
      %v304 = vunpack.c.0.s8 %v303
      %v305 = vlaneseq
      %v306 = vshrl.u32 %v305, 7
      %v307 = vsub.s32 %v304, %v306
      %v308 = vrot.slane %v301, %v307
      %v310 = vunpack.c.l.s4 1983009808
      %v311 = vunpack.c.0.s8 %v310
      %v312 = vlaneseq
      %v313 = vshrl.u32 %v312, 7
      %v314 = vsub.s32 %v311, %v313
      %v315 = vrot.slane %v299, %v314
      %316 = vrot.lane.b32.xlu0 %v308, 127
      %v317 = vpop.permute.xlu0 %316
      %318 = vrot.lane.b32.xlu0 %v315, 127
      %v319 = vpop.permute.xlu0 %318
      %v320 = vrot.slane %v317, 4
      %v321 = vrot.slane %v319, 4
      %vm322 = vcmask 1043456
      %v323 = vsel %vm322, %v320, %v321
      %vm324 = vcmask 1039360
      %v325 = vsel %vm324, %v317, %v323
      %328 = vst [vmem:[#allocation2] sm:$0xcc] %v325
      %vm329 = vcmask 257026
      %330 = vst.msk [vmem:[#allocation2 + $0x8] sm:$0xc] %vm329, %v319
      %v331 = vld [vmem:[%s250] sm:$0x3f]
      %v333 = vcombine.high %v331, %v331
      %v335 = vunpack.c.l.s4 1983009808
      %v336 = vunpack.c.0.s8 %v335
      %v337 = vlaneseq
      %v338 = vshrl.u32 %v337, 7
      %v339 = vsub.s32 %v336, %v338
      %v340 = vrot.slane %v331, %v339
      %v342 = vunpack.c.l.s4 1983009808
      %v343 = vunpack.c.0.s8 %v342
      %v344 = vlaneseq
      %v345 = vshrl.u32 %v344, 7
      %v346 = vsub.s32 %v343, %v345
      %v347 = vrot.slane %v333, %v346
      %348 = vrot.lane.b32.xlu0 %v340, 126
      %v349 = vpop.permute.xlu0 %348
      %350 = vrot.lane.b32.xlu0 %v347, 126
      %v351 = vpop.permute.xlu0 %350
      %v352 = vrot.slane %v349, 4
      %v353 = vrot.slane %v351, 4
      %v354 = vsel %vm322, %v352, %v353
      %vm355 = vcmask 1031168
      %v356 = vsel %vm355, %v349, %v354
      %359 = vst [vmem:[#allocation2 + $0xc] sm:$0x33] %v356
      %360 = vst.msk [vmem:[#allocation2 + $0x14] sm:$0x3] %vm297, %v351
      %v361 = vld [vmem:[%s250] sm:$0x3f]
      %v363 = vcombine.low %v361, %v361
      %v365 = vunpack.c.l.s4 1983009808
      %v366 = vunpack.c.0.s8 %v365
      %v367 = vlaneseq
      %v368 = vshrl.u32 %v367, 7
      %v369 = vsub.s32 %v366, %v368
      %v370 = vrot.slane %v363, %v369
      %v372 = vunpack.c.l.s4 1983009808
      %v373 = vunpack.c.0.s8 %v372
      %v374 = vlaneseq
      %v375 = vshrl.u32 %v374, 7
      %v376 = vsub.s32 %v373, %v375
      %v377 = vrot.slane %v361, %v376
      %378 = vrot.lane.b32.xlu0 %v370, 110
      %v379 = vpop.permute.xlu0 %378
      %380 = vrot.lane.b32.xlu0 %v377, 110
      %v381 = vpop.permute.xlu0 %380
      %v382 = vrot.slane %v379, 4
      %v383 = vrot.slane %v381, 4
      %v384 = vsel %vm322, %v382, %v383
      %vm385 = vcmask 900096
      %v386 = vsel %vm385, %v379, %v384
      %389 = vst [vmem:[#allocation2 + $0xc] sm:$0xcc] %v386
      %390 = vst.msk [vmem:[#allocation2 + $0x14] sm:$0xc] %vm329, %v381
      %v391 = vld [vmem:[%s250] sm:$0x3f]
      %v393 = vcombine.high %v391, %v391
      %v395 = vunpack.c.l.s4 1983009808
      %v396 = vunpack.c.0.s8 %v395
      %v397 = vlaneseq
      %v398 = vshrl.u32 %v397, 7
      %v399 = vsub.s32 %v396, %v398
      %v400 = vrot.slane %v391, %v399
      %v402 = vunpack.c.l.s4 1983009808
      %v403 = vunpack.c.0.s8 %v402
      %v404 = vlaneseq
      %v405 = vshrl.u32 %v404, 7
      %v406 = vsub.s32 %v403, %v405
      %v407 = vrot.slane %v393, %v406
      %408 = vrot.lane.b32.xlu0 %v400, 109
      %v409 = vpop.permute.xlu0 %408
      %410 = vrot.lane.b32.xlu0 %v407, 109
      %v411 = vpop.permute.xlu0 %410
      %v412 = vrot.slane %v409, 4
      %v413 = vrot.slane %v411, 4
      %v414 = vsel %vm322, %v412, %v413
      %vm415 = vcmask 891904
      %v416 = vsel %vm415, %v409, %v414
      %419 = vst [vmem:[#allocation2 + $0x18] sm:$0x33] %v416
      %420 = vst.msk [vmem:[#allocation2 + $0x20] sm:$0x3] %vm297, %v411
      %v421 = vld [vmem:[%s250] sm:$0x3f]
      %v423 = vcombine.low %v421, %v421
      %v425 = vunpack.c.l.s4 1983009808
      %v426 = vunpack.c.0.s8 %v425
      %v427 = vlaneseq
      %v428 = vshrl.u32 %v427, 7
      %v429 = vsub.s32 %v426, %v428
      %v430 = vrot.slane %v423, %v429
      %v432 = vunpack.c.l.s4 1983009808
      %v433 = vunpack.c.0.s8 %v432
      %v434 = vlaneseq
      %v435 = vshrl.u32 %v434, 7
      %v436 = vsub.s32 %v433, %v435
      %v437 = vrot.slane %v421, %v436
      %438 = vrot.lane.b32.xlu0 %v430, 108
      %v439 = vpop.permute.xlu0 %438
      %440 = vrot.lane.b32.xlu0 %v437, 108
      %v441 = vpop.permute.xlu0 %440
      %v442 = vrot.slane %v439, 4
      %v443 = vrot.slane %v441, 4
      %v444 = vsel %vm322, %v442, %v443
      %vm445 = vcmask 883712
      %v446 = vsel %vm445, %v439, %v444
      %449 = vst [vmem:[#allocation2 + $0x18] sm:$0xcc] %v446
      %450 = vst.msk [vmem:[#allocation2 + $0x20] sm:$0xc] %vm329, %v441
      %v451 = vld [vmem:[%s250] sm:$0x3f]
      %v453 = vcombine.high %v451, %v451
      %v455 = vunpack.c.l.s4 1983009808
      %v456 = vunpack.c.0.s8 %v455
      %v457 = vlaneseq
      %v458 = vshrl.u32 %v457, 7
      %v459 = vsub.s32 %v456, %v458
      %v460 = vrot.slane %v451, %v459
      %v462 = vunpack.c.l.s4 1983009808
      %v463 = vunpack.c.0.s8 %v462
      %v464 = vlaneseq
      %v465 = vshrl.u32 %v464, 7
      %v466 = vsub.s32 %v463, %v465
      %v467 = vrot.slane %v453, %v466
      %468 = vrot.lane.b32.xlu0 %v460, 92
      %v469 = vpop.permute.xlu0 %468
      %470 = vrot.lane.b32.xlu0 %v467, 92
      %v471 = vpop.permute.xlu0 %470
      %v472 = vrot.slane %v469, 4
      %v473 = vrot.slane %v471, 4
      %v474 = vsel %vm322, %v472, %v473
      %vm475 = vcmask 752640
      %v476 = vsel %vm475, %v469, %v474
      %479 = vst [vmem:[#allocation2 + $0x24] sm:$0x33] %v476
      %480 = vst.msk [vmem:[#allocation2 + $0x2c] sm:$0x3] %vm297, %v471
      %v481 = vld [vmem:[%s250] sm:$0x3f]
      %v483 = vcombine.low %v481, %v481
      %v485 = vunpack.c.l.s4 1983009808
      %v486 = vunpack.c.0.s8 %v485
      %v487 = vlaneseq
      %v488 = vshrl.u32 %v487, 7
      %v489 = vsub.s32 %v486, %v488
      %v490 = vrot.slane %v483, %v489
      %v492 = vunpack.c.l.s4 1983009808
      %v493 = vunpack.c.0.s8 %v492
      %v494 = vlaneseq
      %v495 = vshrl.u32 %v494, 7
      %v496 = vsub.s32 %v493, %v495
      %v497 = vrot.slane %v481, %v496
      %498 = vrot.lane.b32.xlu0 %v490, 91
      %v499 = vpop.permute.xlu0 %498
      %500 = vrot.lane.b32.xlu0 %v497, 91
      %v501 = vpop.permute.xlu0 %500
      %v502 = vrot.slane %v499, 4
      %v503 = vrot.slane %v501, 4
      %v504 = vsel %vm322, %v502, %v503
      %vm505 = vcmask 744448
      %v506 = vsel %vm505, %v499, %v504
      %509 = vst [vmem:[#allocation2 + $0x24] sm:$0xcc] %v506
      %510 = vst.msk [vmem:[#allocation2 + $0x2c] sm:$0xc] %vm329, %v501
      %v511 = vld [vmem:[%s250] sm:$0x3f]
      %v513 = vcombine.high %v511, %v511
      %v515 = vunpack.c.l.s4 1983009808
      %v516 = vunpack.c.0.s8 %v515
      %v517 = vlaneseq
      %v518 = vshrl.u32 %v517, 7
      %v519 = vsub.s32 %v516, %v518
      %v520 = vrot.slane %v511, %v519
      %v522 = vunpack.c.l.s4 1983009808
      %v523 = vunpack.c.0.s8 %v522
      %v524 = vlaneseq
      %v525 = vshrl.u32 %v524, 7
      %v526 = vsub.s32 %v523, %v525
      %v527 = vrot.slane %v513, %v526
      %528 = vrot.lane.b32.xlu0 %v520, 90
      %v529 = vpop.permute.xlu0 %528
      %530 = vrot.lane.b32.xlu0 %v527, 90
      %v531 = vpop.permute.xlu0 %530
      %v532 = vrot.slane %v529, 4
      %v533 = vrot.slane %v531, 4
      %v534 = vsel %vm322, %v532, %v533
      %vm535 = vcmask 736256
      %v536 = vsel %vm535, %v529, %v534
      %539 = vst [vmem:[#allocation2 + $0x30] sm:$0x33] %v536
      %540 = vst.msk [vmem:[#allocation2 + $0x38] sm:$0x3] %vm297, %v531
      %v541 = vld [vmem:[%s2] sm:$0xf]
      %v542 = vld [vmem:[#allocation2] sm:$0xff]
      %v543 = vld [vmem:[#allocation2 + $0x8] sm:$0xf]
      %v544 = vld [vmem:[#allocation2 + $0xc] sm:$0xff]
      %v545 = vld [vmem:[#allocation2 + $0x14] sm:$0xf]
      %v546 = vld [vmem:[#allocation2 + $0x18] sm:$0xff]
      %v547 = vld [vmem:[#allocation2 + $0x20] sm:$0xf]
      %v548 = vld [vmem:[#allocation2 + $0x24] sm:$0xff]
      %v549 = vld [vmem:[#allocation2 + $0x2c] sm:$0xf]
      %v550 = vld [vmem:[#allocation2 + $0x30] sm:$0x33]
      %v551 = vld [vmem:[#allocation2 + $0x38] sm:$0x3]
      %v562 = vunpack.c.l.b16 %v542
      %v563 = vunpack.c.h.b16 %v542
      %v564 = vunpack.c.l.b16 %v543
      %v565 = vunpack.c.l.b16 %v544
      %v566 = vunpack.c.h.b16 %v544
      %v567 = vunpack.c.l.b16 %v545
      %v568 = vunpack.c.l.b16 %v546
      %v569 = vunpack.c.h.b16 %v546
      %v570 = vunpack.c.l.b16 %v547
      %v571 = vunpack.c.l.b16 %v548
      %v572 = vunpack.c.h.b16 %v548
      %v573 = vunpack.c.l.b16 %v549
      %v574 = vunpack.c.l.b16 %v550
      %v575 = vunpack.c.h.b16 %v550
      %v576 = vunpack.c.l.b16 %v551
      %v577 = vpack.c.b16 %v565, %v562
      %v578 = vpack.c.b16 %v566, %v563
      %v579 = vpack.c.b16 %v567, %v564
      %v580 = vpack.c.b16 %v571, %v568
      %v581 = vpack.c.b16 %v572, %v569
      %v582 = vpack.c.b16 %v573, %v570
      %v583 = vpack.c.b16 %v574, %v574
      %v584 = vpack.c.b16 %v575, %v575
      %v585 = vpack.c.b16 %v576, %v576
      %vm592 = vcmask 293888
      %v594 = vsel %vm592, %v541, 0
      %vm596 = vcmask 1041408
      %v598 = vsel %vm596, %v583, 0
      %v601 = vsel %vm596, %v584, 0
      %v604 = vsel %vm596, %v585, 0
      %606 = vmatprep.subr.bf16.mxu0 %v578
      %607 = vmatpush1.bf16.msra.mxu0 %v577
      %608 = vmatprep.subr.bf16.mxu0 %v581
      %609 = vmatpush1.bf16.msra.mxu0 %v580
      %610 = vmatprep.subr.bf16.mxu0 %v601
      %611 = vmatpush1.bf16.msra.mxu0 %v598
      %612 = vmatprep.subr.bf16.mxu0 0
      %613 = vmatpush1.bf16.msra.mxu0 0
      %614 = vmatprep.subr.bf16.mxu0 0
      %615 = vmatpush1.bf16.msra.mxu0 0
      %616 = vmatprep.subr.bf16.mxu0 0
      %617 = vmatpush1.bf16.msra.mxu0 0
      %618 = vmatprep.subr.bf16.mxu0 0
      %619 = vmatpush1.bf16.msra.mxu0 0
      %620 = vmatprep.subr.bf16.mxu0 0
      %621 = vmatpush1.bf16.msra.mxu0 0
      %622 = vmatprep.subr.bf16.mxu0 0
      %623 = vmatpush1.bf16.msra.mxu0 0
      %624 = vmatprep.subr.bf16.mxu0 0
      %625 = vmatpush1.bf16.msra.mxu0 0
      %626 = vmatprep.subr.bf16.mxu0 0
      %627 = vmatpush1.bf16.msra.mxu0 0
      %628 = vmatprep.subr.bf16.mxu0 0
      %629 = vmatpush1.bf16.msra.mxu0 0
      %630 = vmatprep.subr.bf16.mxu0 0
      %631 = vmatpush1.bf16.msra.mxu0 0
      %632 = vmatprep.subr.bf16.mxu0 0
      %633 = vmatpush1.bf16.msra.mxu0 0
      %634 = vmatprep.subr.bf16.mxu0 0
      %635 = vmatpush1.bf16.msra.mxu0 0
      %636 = vmatprep.subr.bf16.mxu0 0
      %637 = vmatpush1.bf16.msra.mxu0 0
      %638 = vmatprep.mubr.bf16.mxu0 0
      %639 = vmatmul.mubr.bf16.gmra.mrb[0].mxu0 %v594
      %v640 = vpop.f32.mrb[0].mxu0
      %v641 = vadd.f32 0.0, %v640
      %v642 = vpop.f32.mrb[0].mxu0
      %v643 = vadd.f32 0.0, %v642
      %v644 = vpop.f32.mrb[0].mxu0
      %v645 = vpop.f32.mrb[0].mxu0
      %646 = vdwg.mxu0
      %647 = vmatprep.subr.bf16.mxu0 0
      %648 = vmatpush1.bf16.msra.mxu0 %v579
      %649 = vmatprep.subr.bf16.mxu0 0
      %650 = vmatpush1.bf16.msra.mxu0 %v582
      %651 = vmatprep.subr.bf16.mxu0 0
      %652 = vmatpush1.bf16.msra.mxu0 %v604
      %653 = vmatprep.subr.bf16.mxu0 0
      %654 = vmatpush1.bf16.msra.mxu0 0
      %655 = vmatprep.subr.bf16.mxu0 0
      %656 = vmatpush1.bf16.msra.mxu0 0
      %657 = vmatprep.subr.bf16.mxu0 0
      %658 = vmatpush1.bf16.msra.mxu0 0
      %659 = vmatprep.subr.bf16.mxu0 0
      %660 = vmatpush1.bf16.msra.mxu0 0
      %661 = vmatprep.subr.bf16.mxu0 0
      %662 = vmatpush1.bf16.msra.mxu0 0
      %663 = vmatprep.subr.bf16.mxu0 0
      %664 = vmatpush1.bf16.msra.mxu0 0
      %665 = vmatprep.subr.bf16.mxu0 0
      %666 = vmatpush1.bf16.msra.mxu0 0
      %667 = vmatprep.subr.bf16.mxu0 0
      %668 = vmatpush1.bf16.msra.mxu0 0
      %669 = vmatprep.subr.bf16.mxu0 0
      %670 = vmatpush1.bf16.msra.mxu0 0
      %671 = vmatprep.subr.bf16.mxu0 0
      %672 = vmatpush1.bf16.msra.mxu0 0
      %673 = vmatprep.subr.bf16.mxu0 0
      %674 = vmatpush1.bf16.msra.mxu0 0
      %675 = vmatprep.subr.bf16.mxu0 0
      %676 = vmatpush1.bf16.msra.mxu0 0
      %677 = vmatprep.subr.bf16.mxu0 0
      %678 = vmatpush1.bf16.msra.mxu0 0
      %679 = vmatprep.mubr.bf16.mxu0 0
      %680 = vmatmul.mubr.bf16.gmra.mrb[0].mxu0 %v594
      %v681 = vpop.f32.mrb[0].mxu0
      %v682 = vadd.f32 0.0, %v681
      %v683 = vpop.f32.mrb[0].mxu0
      %v684 = vpop.f32.mrb[0].mxu0
      %v685 = vpop.f32.mrb[0].mxu0
      %686 = vdwg.mxu0
      %v687 = vld [vmem:[%s0] sm:$0x7]
      %v689 = vlaneseq
      %v690 = vshrl.u32 %v689, 7
      %v691 = vsub.s32 0, %v690
      %v692 = vrot.slane %v687, %v691
      %v693 = vlaneseq
      %v694 = vshrl.u32 %v693, 7
      %v695 = vsub.s32 1, %v694
      %v696 = vrot.slane %v687, %v695
      %v697 = vlaneseq
      %v698 = vshrl.u32 %v697, 7
      %v699 = vsub.s32 2, %v698
      %v700 = vrot.slane %v687, %v699
      %v704 = vmul.f32 %v641, %v692
      %v705 = vmul.f32 %v643, %v696
      %v706 = vmul.f32 %v682, %v700
      %v707 = vpack.c.bf16 %v704, %v704
      %v708 = vpack.c.bf16 %v705, %v705
      %v709 = vpack.c.bf16 %v706, %v706
      %v713 = vunpack.c.l.b16 %v707
      %v714 = vunpack.c.l.b16 %v708
      %v715 = vunpack.c.l.b16 %v709
      %v716 = vpack.c.b16 %v714, %v713
      %v717 = vpack.c.b16 %v715, %v715
      %720 = vst [vmem:[%s259] sm:$0xff] %v716
      %vm721 = vcmask 257024
      %722 = vst.msk [vmem:[%s259 + $0x8] sm:$0xf] %vm721, %v717
      %v723 = vld [vmem:[%s264] sm:$0xff]
      %v724 = vadd.f32 %v704, %v705
      %vm725 = vcmask 261120
      %v726 = vsel %vm725, %v706, 0.0
      %v727 = vadd.f32 %v724, %v726
      %728 = vadd.xlane.f32.xlu0 %v727
      %v729 = vpop.xlane.xlu0 %728
      %v730 = vadd.f32 %v723, %v729
      %vm731 = vcmask 7168
      %732 = vst.msk [vmem:[%s264] sm:$0xff] %vm731, %v730
      %v733 = vld [vmem:[%s268] sm:$0xff]
      %v734 = vmul.f32 %v704, %v704
      %v735 = vmul.f32 %v705, %v705
      %v736 = vmul.f32 %v706, %v706
      %v737 = vadd.f32 %v734, %v735
      %v738 = vsel %vm725, %v736, 0.0
      %v739 = vadd.f32 %v737, %v738
      %740 = vadd.xlane.f32.xlu0 %v739
      %v741 = vpop.xlane.xlu0 %740
      %v742 = vadd.f32 %v733, %v741
      %743 = vst.msk [vmem:[%s268] sm:$0xff] %vm731, %v742
      %s744 = smul.u32 3, %s22
      %p745 = scmp.lt.s32.totalorder %s21, 1
      %s746 = scalar_select %p745, %s21, 1
      %p747 = scmp.lt.s32.totalorder %s744, 2
      %s748 = scalar_select %p747, %s744, 2
      %s749 = smul.addr %s746, 3
      %s750 = sadd.s32 %s748, %s749
      %s751 = smul.addr %s750, 4
      %s752 = scalar_lea.vmem %s3, %s751
      %p753 = scmp.lt.s32.totalorder %s21, 1
      %s754 = scalar_select %p753, %s21, 1
      %s755 = smul.addr %s754, 8
      %s756 = scalar_lea.vmem %s4, %s755
      %p757 = scmp.lt.s32.totalorder %s21, 1
      %s758 = scalar_select %p757, %s21, 1
      %s759 = smul.addr %s758, 8
      %s760 = scalar_lea.vmem %s5, %s759
      // Predicated region
      $region37: #{conv_batchnorm_prelu.2} parent=31 // pred_check
        %p761 = pneg %p117
      $region38: #{conv_batchnorm_prelu.2} parent=31 // pred_check_branch
        %763 = sbr.rel (%p761) target = $region40
      $region39: #{conv_batchnorm_prelu.2} parent=31 // pred_region
        %s764 = smul.u32 3, %s22
      $region40: #{conv_batchnorm_prelu.2} parent=31 // pred_fallthru
        _
      // Predicated region
      $region41: #{conv_batchnorm_prelu.2} parent=31 // pred_check
        %p765 = pneg %p143
      $region42: #{conv_batchnorm_prelu.2} parent=31 // pred_check_branch
        %767 = sbr.rel (%p765) target = $region44
      $region43: #{conv_batchnorm_prelu.2} parent=31 // pred_region
        _
      $region44: #{conv_batchnorm_prelu.2} parent=31 // pred_fallthru
        _
      // Predicated region
      $region45: #{conv_batchnorm_prelu.2} parent=31 // pred_check
        %p768 = pneg %p169
      $region46: #{conv_batchnorm_prelu.2} parent=31 // pred_check_branch
        %770 = sbr.rel (%p768) target = $region48
      $region47: #{conv_batchnorm_prelu.2} parent=31 // pred_region
        _
      $region48: #{conv_batchnorm_prelu.2} parent=31 // pred_fallthru
        _
    $region32: #{conv_batchnorm_prelu.2} parent=5 // pred_fallthru
      _
    %p771 = scmp.le.s32.totalorder 2, %s12
    // Predicated region
    $region49: #{conv_batchnorm_prelu.2} parent=5 // pred_check
      %p772 = pneg %p771
    $region50: #{conv_batchnorm_prelu.2} parent=5 // pred_check_branch
      %774 = sbr.rel (%p772) target = $region52
    $region51: #{conv_batchnorm_prelu.2} parent=5 // pred_region
      %s775 = ssub.s32 %s12, 2
      // Predicated region
      $region53: #{conv_batchnorm_prelu.2} parent=51 // pred_check
        %p776 = pneg %p123
      $region54: #{conv_batchnorm_prelu.2} parent=51 // pred_check_branch
        %778 = sbr.rel (%p776) target = $region56
      $region55: #{conv_batchnorm_prelu.2} parent=51 // pred_region
        %s779 = smul.u32 3, %s24
        %p780 = scmp.lt.s32.totalorder %s23, 1
        %s781 = scalar_select %p780, %s23, 1
        %p782 = scmp.lt.s32.totalorder %s779, 2
        %s783 = scalar_select %p782, %s779, 2
        %s784 = smul.addr %s781, 3
        %s785 = sadd.s32 %s783, %s784
        %s786 = smul.addr %s785, 4
        %s787 = scalar_lea.vmem %s3, %s786
      $region56: #{conv_batchnorm_prelu.2} parent=51 // pred_fallthru
        _
      // Predicated region
      $region57: #{conv_batchnorm_prelu.2} parent=51 // pred_check
        %p788 = pneg %p149
      $region58: #{conv_batchnorm_prelu.2} parent=51 // pred_check_branch
        %790 = sbr.rel (%p788) target = $region60
      $region59: #{conv_batchnorm_prelu.2} parent=51 // pred_region
        %p791 = scmp.lt.s32.totalorder %s23, 1
        %s792 = scalar_select %p791, %s23, 1
        %s793 = smul.addr %s792, 8
        %s794 = scalar_lea.vmem %s4, %s793
      $region60: #{conv_batchnorm_prelu.2} parent=51 // pred_fallthru
        _
      // Predicated region
      $region61: #{conv_batchnorm_prelu.2} parent=51 // pred_check
        %p795 = pneg %p175
      $region62: #{conv_batchnorm_prelu.2} parent=51 // pred_check_branch
        %797 = sbr.rel (%p795) target = $region64
      $region63: #{conv_batchnorm_prelu.2} parent=51 // pred_region
        %p798 = scmp.lt.s32.totalorder %s23, 1
        %s799 = scalar_select %p798, %s23, 1
        %s800 = smul.addr %s799, 8
        %s801 = scalar_lea.vmem %s5, %s800
      $region64: #{conv_batchnorm_prelu.2} parent=51 // pred_fallthru
        _
    $region52: #{conv_batchnorm_prelu.2} parent=5 // pred_fallthru
      _
  $region6: #{conv_batchnorm_prelu.2} parent=0 // loop_footer
    %s16 = sadd.s32 1, %s12
  $region7: #{conv_batchnorm_prelu.2} parent=0 // loop_footer_branch
    %11 = sbr.rel target = $region3
  $region8: #{conv_batchnorm_prelu.2} parent=0 // loop_exit
    _

</llo_original>
